<compile_context>
chip_gen: v6e
topology: v6e:2x2x1
jax: 0.10.0
libtpu: 0.0.40
codegen_flags: <defaults>
</compile_context>

<pallas_src>
import functools

import jax
import jax.numpy as jnp
from jax import lax
from jax.experimental import pallas as pl
from jax.experimental.pallas import tpu as pltpu

_MIB = 1024 * 1024


def _mlp_kernel(x_ref, w1_ref, b1_ref, w2_ref, b2_ref, w3_ref, b3_ref, o_ref):
    """One batch tile of the fused MLP.

    x_ref:  (bt, V)   f32/bf16  natural batch-major layout (cast + transposed
                                contraction done in-kernel; XLU has slack vs MXU)
    w1_ref: (H1, V)   bf16      PyTorch (out, in) layout
    b1_ref: (H1, 1)   f32
    w2_ref: (H2, H1)  bf16
    b2_ref: (H2, 1)   f32
    w3_ref: (H2, 1)   f32       PyTorch (1, H2) weight as a column
    b3_ref: (1, 1)    f32
    o_ref:  (1, bt)   f32       lane-dense output row

    Dropout(0.5) is identity in eval mode (what this forward models).
    """
    xb = x_ref[...].astype(jnp.bfloat16)                               # (bt, V)

    # Layer 1: h1 = W1 @ x^T (contract dim-1 of both operands -> no wrapper transpose).
    h1 = lax.dot_general(w1_ref[...], xb, (((1,), (1,)), ((), ())),
                         preferred_element_type=jnp.float32)           # (H1, bt)
    h1 = jnp.maximum(h1 + b1_ref[...], 0.0)
    # TODO(synk): training-mode dropout (pltpu.prng_random_bits mask + 1/(1-p) scaling).

    # Layer 2.
    h2 = jnp.dot(w2_ref[...], h1.astype(jnp.bfloat16),
                 preferred_element_type=jnp.float32)                   # (H2, bt)
    h2 = jnp.maximum(h2 + b2_ref[...], 0.0)

    # Layer 3 (out_features=1): VPU multiply + sublane reduction, not a width-1 MXU matmul.
    logits = jnp.sum(h2 * w3_ref[...], axis=0, keepdims=True) + b3_ref[...]   # (1, bt)

    # Exact sigmoid: EUP exp + a single divide on a tiny (1, bt) row (PyTorch parity).
    o_ref[...] = (1.0 / (1.0 + jnp.exp(-logits))).astype(o_ref.dtype)


def prepare_params(w1, b1, w2, b2, w3, b3):
    """One-time conversion of PyTorch-layout parameters into kernel-ready layout.

    Doing this once outside the jitted forward removes a full per-call HBM pass over
    W1/W2 (the dominant tensors for large vocab_size)."""
    H1, H2 = w1.shape[0], w2.shape[0]
    return (
        jnp.asarray(w1, jnp.bfloat16),                    # (H1, V)  bf16 MXU operand
        jnp.asarray(b1, jnp.float32).reshape(H1, 1),
        jnp.asarray(w2, jnp.bfloat16),                    # (H2, H1) bf16 MXU operand
        jnp.asarray(b2, jnp.float32).reshape(H2, 1),
        jnp.asarray(w3, jnp.float32).reshape(H2, 1),
        jnp.asarray(b3, jnp.float32).reshape(1, 1),
    )


def _round_up(n, m):
    return ((n + m - 1) // m) * m


def _vmem_estimate(tile, vocab, h1, h2):
    """Rough per-step VMEM working set in bytes."""
    x_bytes = 2 * vocab * tile * 4                    # f32 x tile, double-buffered
    w_bytes = (h1 * vocab + h2 * h1) * 2              # bf16 weights, single-buffered
    misc = (h1 + 2 * h2 + 8) * 4 * 8                  # bias / w3 columns (sublane padded)
    act = tile * (vocab * 2 + h1 * 4 + h1 * 2 + h2 * 4)   # xb bf16 + h1 f32/bf16 + h2 f32
    out = 2 * tile * 4                                # (1, tile) f32 output, double-buffered
    return x_bytes + w_bytes + misc + act + out


def _hw_info():
    """(vmem_capacity_bytes, has_two_tensorcores). Conservative fallbacks."""
    vmem_cap = 64 * _MIB
    try:
        vmem_cap = int(pltpu.get_tpu_info().vmem_capacity_bytes)
    except Exception:
        pass
    kind = ""
    try:
        kind = jax.devices()[0].device_kind.lower()
    except Exception:
        pass
    two_cores = ("v7" in kind) or ("7x" in kind)
    return vmem_cap, two_cores


def _pick_batch_tile(batch, vocab, h1, h2, budget_bytes, cap):
    """Largest lane-dense tile (multiple of 128, <= cap) whose working set fits VMEM."""
    tile = min(cap, max(128, _round_up(batch, 128)))
    while tile > 128 and _vmem_estimate(tile, vocab, h1, h2) > budget_bytes:
        tile -= 128
    return tile


@functools.partial(jax.jit, static_argnames=("batch_tile", "num_tiles", "vmem_limit"))
def _forward_impl(x, w1b, b1c, w2b, b2c, w3c, b3c, *, batch_tile, num_tiles, vmem_limit):
    B = x.shape[0]
    x2d = x.reshape(B, -1)                            # nn.Flatten / x.view(x.size(0), -1)
    if x2d.dtype != jnp.float32 and x2d.dtype != jnp.bfloat16:
        x2d = x2d.astype(jnp.float32)
    V = x2d.shape[1]
    H1, H2 = w1b.shape[0], w2b.shape[0]

    B_pad = batch_tile * num_tiles
    if B_pad != B:
        x2d = jnp.pad(x2d, ((0, B_pad - B), (0, 0)))  # no-op when B divides evenly

    # Grid-invariant operands: hold a single VMEM copy (no double buffering).
    def _const(shape):
        return pl.BlockSpec(shape, lambda i: (0, 0),
                            pipeline_mode=pl.Buffered(buffer_count=1))

    cost = pl.CostEstimate(
        flops=2 * B_pad * (V * H1 + H1 * H2 + H2),
        transcendentals=B_pad,
        bytes_accessed=int(B_pad * V * x2d.dtype.itemsize
                           + (H1 * V + H2 * H1) * 2
                           + (H1 + 2 * H2 + 1) * 4
                           + B_pad * 4),
    )

    # TODO(synk): for very large vocab_size (bf16 W1 >= ~24 MiB, esp. on v7x's 64 MiB VMEM),
    # add a K-axis grid over V ("arbitrary", last, 256-aligned on v6e/v7x) with an h1 f32
    # accumulator in VMEM scratch, or stream W1 from pl.ANY with a manual double-buffered DMA.
    out = pl.pallas_call(
        _mlp_kernel,
        out_shape=jax.ShapeDtypeStruct((1, B_pad), jnp.float32),
        grid_spec=pltpu.PrefetchScalarGridSpec(
            num_scalar_prefetch=0,
            grid=(num_tiles,),
            in_specs=[
                pl.BlockSpec((batch_tile, V), lambda i: (i, 0)),   # x tile, natural layout
                _const((H1, V)),                                   # W1
                _const((H1, 1)),                                   # b1
                _const((H2, H1)),                                  # W2
                _const((H2, 1)),                                   # b2
                _const((H2, 1)),                                   # w3 column
                _const((1, 1)),                                    # b3
            ],
            out_specs=pl.BlockSpec((1, batch_tile), lambda i: (0, i)),
        ),
        compiler_params=pltpu.CompilerParams(
            dimension_semantics=("parallel",),
            vmem_limit_bytes=vmem_limit,
        ),
        cost_estimate=cost,
    )(x2d, w1b, b1c, w2b, b2c, w3c, b3c)

    return out[0, :B].reshape(B, 1)


def neural_network_forward(x, params, *, batch_tile=None):
    """Eval-mode forward of NeuralNetwork. `params` comes from prepare_params()."""
    w1b, b1c, w2b, b2c, w3c, b3c = params
    B = x.shape[0]
    V = int(x.size) // B
    H1, H2 = w1b.shape[0], w2b.shape[0]

    vmem_cap, two_cores = _hw_info()
    # ~78% of physical VMEM: ~50 MiB headroomed budget on v7x, ~100 MiB on v5e/v6e.
    budget = max(32 * _MIB, int(vmem_cap * 0.78))

    if batch_tile is None:
        # v5e/v6e are single-TensorCore: allow bigger tiles; cap at 512 on v7x so the
        # parallel axis still has >= 2 steps to shard across its two cores.
        cap = 512 if two_cores else 1024
        batch_tile = _pick_batch_tile(B, V, H1, H2, budget, cap)
    assert batch_tile % 128 == 0, "batch_tile must be a multiple of 128 (lane width)"

    num_tiles = -(-B // batch_tile)
    if two_cores and num_tiles > 1 and num_tiles % 2:
        num_tiles += 1                                # even split across v7x megacore

    vmem_limit = int(min(budget, max(32 * _MIB, 2 * _vmem_estimate(batch_tile, V, H1, H2))))
    return _forward_impl(x, w1b, b1c, w2b, b2c, w3c, b3c,
                         batch_tile=batch_tile, num_tiles=num_tiles,
                         vmem_limit=vmem_limit)


def init_params(key, vocab_size, dtype=jnp.float32):
    """Deterministic synthetic parameters in PyTorch layout: weight (out, in), bias (out,)."""
    ks = jax.random.split(key, 6)

    def uinit(k, fan_in, shape):
        bound = 1.0 / jnp.sqrt(fan_in)
        return jax.random.uniform(k, shape, dtype, minval=-bound, maxval=bound)

    w1 = uinit(ks[0], vocab_size, (512, vocab_size))
    b1 = uinit(ks[1], vocab_size, (512,))
    w2 = uinit(ks[2], 512, (256, 512))
    b2 = uinit(ks[3], 512, (256,))
    w3 = uinit(ks[4], 256, (1, 256))
    b3 = uinit(ks[5], 256, (1,))
    return w1, b1, w2, b2, w3, b3


def reference_forward(x, w1, b1, w2, b2, w3, b3):
    """Pure-JAX reference of the PyTorch forward (eval mode), emulating the kernel's
    bf16-input / f32-accumulate matmuls so the comparison is apples-to-apples."""
    f32 = jnp.float32
    xb = x.reshape(x.shape[0], -1).astype(jnp.bfloat16).astype(f32)
    w1b = w1.astype(jnp.bfloat16).astype(f32)
    w2b = w2.astype(jnp.bfloat16).astype(f32)
    h1 = jnp.maximum(xb @ w1b.T + b1.astype(f32), 0.0)
    h1 = h1.astype(jnp.bfloat16).astype(f32)
    h2 = jnp.maximum(h1 @ w2b.T + b2.astype(f32), 0.0)
    logits = jnp.sum(h2 * w3.astype(f32), axis=-1, keepdims=True) + b3.astype(f32)
    return jax.nn.sigmoid(logits)


if __name__ == "__main__":
    vocab_size = 128
    key = jax.random.PRNGKey(0)
    kx1, kx2, kp = jax.random.split(key, 3)
    raw_params = init_params(kp, vocab_size)
    params = prepare_params(*raw_params)          # one-time, kernel-ready layout

    # Case 1: small batch, trailing dims exercise the flatten ((8, 2, 64) -> (8, 128)),
    # auto-selected batch tile (batch padded inside the kernel call to one 128-lane tile).
    x1 = jax.random.normal(kx1, (8, 2, 64), dtype=jnp.float32)
    out1 = jax.block_until_ready(neural_network_forward(x1, params))
    ref1 = reference_forward(x1, *raw_params)
    assert out1.shape == (8, 1)
    assert jnp.allclose(out1, ref1, atol=5e-3), "case 1 mismatch vs reference"

    # Case 2: batch not divisible by the tile + multi-step grid (200 -> 2 tiles of 128).
    x2 = jax.random.normal(kx2, (200, vocab_size), dtype=jnp.float32)
    out2 = jax.block_until_ready(neural_network_forward(x2, params, batch_tile=128))
    ref2 = reference_forward(x2, *raw_params)
    assert out2.shape == (200, 1)
    assert jnp.allclose(out2, ref2, atol=5e-3), "case 2 mismatch vs reference"

    print("KERNEL_OK")
</pallas_src>

<mosaic_0001>
module attributes {stable_mosaic.version = 11 : i64} {
  func.func @_mlp_kernel(%arg0: i32, %arg1: memref<128x128xf32, #tpu.memory_space<vmem>>, %arg2: memref<512x128xbf16, #tpu.memory_space<vmem>>, %arg3: memref<512x1xf32, #tpu.memory_space<vmem>>, %arg4: memref<256x512xbf16, #tpu.memory_space<vmem>>, %arg5: memref<256x1xf32, #tpu.memory_space<vmem>>, %arg6: memref<256x1xf32, #tpu.memory_space<vmem>>, %arg7: memref<1x1xf32, #tpu.memory_space<vmem>>, %arg8: memref<1x128xf32, #tpu.memory_space<vmem>>) attributes {dimension_semantics = [#tpu.dimension_semantics<parallel>], iteration_bounds = array<i64: 1>, scalar_prefetch = 0 : i64, scratch_operands = 0 : i64, tpu.core_type = #tpu.core_type<tc>, window_params = [{transform_indices = @transform_0, window_bounds = array<i64: 128, 128>}, {pipeline_mode = #tpu.pipeline_mode<synchronous>, transform_indices = @transform_1, window_bounds = array<i64: 512, 128>}, {pipeline_mode = #tpu.pipeline_mode<synchronous>, transform_indices = @transform_2, window_bounds = array<i64: 512, 1>}, {pipeline_mode = #tpu.pipeline_mode<synchronous>, transform_indices = @transform_3, window_bounds = array<i64: 256, 512>}, {pipeline_mode = #tpu.pipeline_mode<synchronous>, transform_indices = @transform_4, window_bounds = array<i64: 256, 1>}, {pipeline_mode = #tpu.pipeline_mode<synchronous>, transform_indices = @transform_5, window_bounds = array<i64: 256, 1>}, {pipeline_mode = #tpu.pipeline_mode<synchronous>, transform_indices = @transform_6, window_bounds = array<i64: 1, 1>}, {transform_indices = @transform_7, window_bounds = array<i64: 1, 128>}]} {
    %c0 = arith.constant 0 : index
    %c0_0 = arith.constant 0 : index
    %0 = vector.load %arg1[%c0, %c0_0] : memref<128x128xf32, #tpu.memory_space<vmem>>, vector<128x128xf32>
    %1 = arith.truncf %0 : vector<128x128xf32> to vector<128x128xbf16>
    %c0_1 = arith.constant 0 : index
    %c0_2 = arith.constant 0 : index
    %2 = vector.load %arg2[%c0_1, %c0_2] : memref<512x128xbf16, #tpu.memory_space<vmem>>, vector<512x128xbf16>
    %cst = arith.constant dense<0.000000e+00> : vector<512x128xf32>
    %3 = tpu.matmul %2, %1, %cst {dimension_numbers = #tpu.dot_dimension_numbers<[1], [1], [0], [0], [0, 0, 1, 0], [], []>} : vector<512x128xbf16>, vector<128x128xbf16>, vector<512x128xf32> -> vector<512x128xf32>
    %c0_3 = arith.constant 0 : index
    %c0_4 = arith.constant 0 : index
    %4 = vector.load %arg3[%c0_3, %c0_4] : memref<512x1xf32, #tpu.memory_space<vmem>>, vector<512x1xf32>
    %5 = vector.broadcast %4 : vector<512x1xf32> to vector<512x128xf32>
    %6 = arith.addf %3, %5 : vector<512x128xf32>
    %cst_5 = arith.constant 0.000000e+00 : f32
    %7 = vector.broadcast %cst_5 : f32 to vector<512x128xf32>
    %8 = arith.maximumf %6, %7 : vector<512x128xf32>
    %c0_6 = arith.constant 0 : index
    %c0_7 = arith.constant 0 : index
    %9 = vector.load %arg4[%c0_6, %c0_7] : memref<256x512xbf16, #tpu.memory_space<vmem>>, vector<256x512xbf16>
    %10 = arith.truncf %8 : vector<512x128xf32> to vector<512x128xbf16>
    %cst_8 = arith.constant dense<0.000000e+00> : vector<256x128xf32>
    %11 = tpu.matmul %9, %10, %cst_8 {dimension_numbers = #tpu.dot_dimension_numbers<[1], [0], [0], [1], [0, 0, 1, 1], [], []>} : vector<256x512xbf16>, vector<512x128xbf16>, vector<256x128xf32> -> vector<256x128xf32>
    %c0_9 = arith.constant 0 : index
    %c0_10 = arith.constant 0 : index
    %12 = vector.load %arg5[%c0_9, %c0_10] : memref<256x1xf32, #tpu.memory_space<vmem>>, vector<256x1xf32>
    %13 = vector.broadcast %12 : vector<256x1xf32> to vector<256x128xf32>
    %14 = arith.addf %11, %13 : vector<256x128xf32>
    %cst_11 = arith.constant 0.000000e+00 : f32
    %15 = vector.broadcast %cst_11 : f32 to vector<256x128xf32>
    %16 = arith.maximumf %14, %15 : vector<256x128xf32>
    %c0_12 = arith.constant 0 : index
    %c0_13 = arith.constant 0 : index
    %17 = vector.load %arg6[%c0_12, %c0_13] : memref<256x1xf32, #tpu.memory_space<vmem>>, vector<256x1xf32>
    %18 = vector.broadcast %17 : vector<256x1xf32> to vector<256x128xf32>
    %19 = arith.mulf %16, %18 : vector<256x128xf32>
    %cst_14 = arith.constant dense<0.000000e+00> : vector<128xf32>
    %20 = vector.multi_reduction <add>, %19, %cst_14 [0] : vector<256x128xf32> to vector<128xf32>
    %21 = vector.shape_cast %20 : vector<128xf32> to vector<1x128xf32>
    %c0_15 = arith.constant 0 : index
    %c0_16 = arith.constant 0 : index
    %22 = vector.load %arg7[%c0_15, %c0_16] : memref<1x1xf32, #tpu.memory_space<vmem>>, vector<1x1xf32>
    %23 = vector.broadcast %22 : vector<1x1xf32> to vector<1x128xf32>
    %24 = arith.addf %21, %23 : vector<1x128xf32>
    %cst_17 = arith.constant 0.000000e+00 : f32
    %25 = vector.broadcast %cst_17 : f32 to vector<1x128xf32>
    %26 = arith.subf %25, %24 : vector<1x128xf32>
    %27 = math.exp %26 : vector<1x128xf32>
    %cst_18 = arith.constant 1.000000e+00 : f32
    %28 = vector.broadcast %cst_18 : f32 to vector<1x128xf32>
    %29 = arith.addf %28, %27 : vector<1x128xf32>
    %cst_19 = arith.constant 1.000000e+00 : f32
    %30 = vector.broadcast %cst_19 : f32 to vector<1x128xf32>
    %31 = arith.divf %30, %29 : vector<1x128xf32>
    %c0_20 = arith.constant 0 : index
    %c0_21 = arith.constant 0 : index
    %32 = vector.load %arg8[%c0_20, %c0_21] : memref<1x128xf32, #tpu.memory_space<vmem>>, vector<1x128xf32>
    tpu.vector_store %arg8[%c0_20, %c0_21], %31 {strides = array<i32>} : memref<1x128xf32, #tpu.memory_space<vmem>>, vector<1x128xf32>,
    return
  }
  func.func @transform_0(%arg0: i32) -> (i32, i32) {
    %c0_i32 = arith.constant 0 : i32
    %c0_i32_0 = arith.constant 0 : i32
    return %arg0, %c0_i32 : i32, i32
  }
  func.func @transform_1(%arg0: i32) -> (i32, i32) {
    %c0_i32 = arith.constant 0 : i32
    %c0_i32_0 = arith.constant 0 : i32
    %c0_i32_1 = arith.constant 0 : i32
    return %c0_i32, %c0_i32_0 : i32, i32
  }
  func.func @transform_2(%arg0: i32) -> (i32, i32) {
    %c0_i32 = arith.constant 0 : i32
    %c0_i32_0 = arith.constant 0 : i32
    %c0_i32_1 = arith.constant 0 : i32
    return %c0_i32, %c0_i32_0 : i32, i32
  }
  func.func @transform_3(%arg0: i32) -> (i32, i32) {
    %c0_i32 = arith.constant 0 : i32
    %c0_i32_0 = arith.constant 0 : i32
    %c0_i32_1 = arith.constant 0 : i32
    return %c0_i32, %c0_i32_0 : i32, i32
  }
  func.func @transform_4(%arg0: i32) -> (i32, i32) {
    %c0_i32 = arith.constant 0 : i32
    %c0_i32_0 = arith.constant 0 : i32
    %c0_i32_1 = arith.constant 0 : i32
    return %c0_i32, %c0_i32_0 : i32, i32
  }
  func.func @transform_5(%arg0: i32) -> (i32, i32) {
    %c0_i32 = arith.constant 0 : i32
    %c0_i32_0 = arith.constant 0 : i32
    %c0_i32_1 = arith.constant 0 : i32
    return %c0_i32, %c0_i32_0 : i32, i32
  }
  func.func @transform_6(%arg0: i32) -> (i32, i32) {
    %c0_i32 = arith.constant 0 : i32
    %c0_i32_0 = arith.constant 0 : i32
    %c0_i32_1 = arith.constant 0 : i32
    return %c0_i32, %c0_i32_0 : i32, i32
  }
  func.func @transform_7(%arg0: i32) -> (i32, i32) {
    %c0_i32 = arith.constant 0 : i32
    %c0_i32_0 = arith.constant 0 : i32
    return %c0_i32, %arg0 : i32, i32
  }
}

</mosaic_0001>

<llo_original>
// kernel: _forward_impl.1
$region0: #{_forward_impl.1}
  #allocation0 [shape = 'u32[]', space=smem, size = 0x4, offset = 0x4, fixed_abs, tag = 'smem constant byte address 0x4 - core index']
  #allocation1 [shape = 'u32[144,128]{1,0:T(1,128)}', space=vmem, size = 0x12000, scoped, tag = 'internal scratch']
  #allocation2 [shape = 'f32[1,1]{1,0:T(1,128)S(1)}', space=vmem, size = 0x200, scoped, tag = 'scoped memory for _forward_impl.1']
  %s0 = inlined_call_operand.vmem [shape: f32[128,128], index: 0, kind: input, shape index: {}]
  %s1 = inlined_call_operand.vmem [shape: bf16[512,128], index: 1, kind: input, shape index: {}]
  %s2 = inlined_call_operand.vmem [shape: f32[512,1], index: 2, kind: input, shape index: {}]
  %s3 = inlined_call_operand.vmem [shape: bf16[256,512], index: 3, kind: input, shape index: {}]
  %s4 = inlined_call_operand.vmem [shape: f32[256,1], index: 4, kind: input, shape index: {}]
  %s5 = inlined_call_operand.vmem [shape: f32[256,1], index: 5, kind: input, shape index: {}]
  %s6 = inlined_call_operand.<no memory space> [shape: f32[1,1], index: 6, kind: input, shape index: {}]
  %s7 = inlined_call_operand.vmem [shape: f32[1,128], index: 7, kind: output, shape index: {}]
  %s8 = sld [smem:[#allocation0]]
  $region38: #{_forward_impl.1} parent=0
    _
  %s10 = ssub.s32 1, %s8
  %s11 = scalar_select 0, %s10, %s8
  %v12 = vstv %s6
  %13 = vst [vmem:[#allocation2] sm:$0x1] %v12
  // Predicated region
  $region2: #{_forward_impl.1} parent=0 // pred_check
    _
  $region3: #{_forward_impl.1} parent=0 // pred_check_branch
    %15 = sbr.rel (0) target = $region5
  $region4: #{_forward_impl.1} parent=0 // pred_region
    _
  $region5: #{_forward_impl.1} parent=0 // pred_fallthru
    _
  // Predicated region
  $region6: #{_forward_impl.1} parent=0 // pred_check
    _
  $region7: #{_forward_impl.1} parent=0 // pred_check_branch
    %17 = sbr.rel (0) target = $region9
  $region8: #{_forward_impl.1} parent=0 // pred_region
    _
  $region9: #{_forward_impl.1} parent=0 // pred_fallthru
    _
  // Predicated region
  $region10: #{_forward_impl.1} parent=0 // pred_check
    _
  $region11: #{_forward_impl.1} parent=0 // pred_check_branch
    %19 = sbr.rel (0) target = $region13
  $region12: #{_forward_impl.1} parent=0 // pred_region
    _
  $region13: #{_forward_impl.1} parent=0 // pred_fallthru
    _
  // Predicated region
  $region14: #{_forward_impl.1} parent=0 // pred_check
    _
  $region15: #{_forward_impl.1} parent=0 // pred_check_branch
    %21 = sbr.rel (0) target = $region17
  $region16: #{_forward_impl.1} parent=0 // pred_region
    _
  $region17: #{_forward_impl.1} parent=0 // pred_fallthru
    _
  // Predicated region
  $region18: #{_forward_impl.1} parent=0 // pred_check
    _
  $region19: #{_forward_impl.1} parent=0 // pred_check_branch
    %23 = sbr.rel (0) target = $region21
  $region20: #{_forward_impl.1} parent=0 // pred_region
    _
  $region21: #{_forward_impl.1} parent=0 // pred_fallthru
    _
  // Predicated region
  $region22: #{_forward_impl.1} parent=0 // pred_check
    _
  $region23: #{_forward_impl.1} parent=0 // pred_check_branch
    %25 = sbr.rel (0) target = $region25
  $region24: #{_forward_impl.1} parent=0 // pred_region
    _
  $region25: #{_forward_impl.1} parent=0 // pred_fallthru
    _
  // Predicated region
  $region26: #{_forward_impl.1} parent=0 // pred_check
    _
  $region27: #{_forward_impl.1} parent=0 // pred_check_branch
    %27 = sbr.rel (0) target = $region29
  $region28: #{_forward_impl.1} parent=0 // pred_region
    _
  $region29: #{_forward_impl.1} parent=0 // pred_fallthru
    _
  %v29 = vld [vmem:[%s0] sm:$0xff]
  %v30 = vld [vmem:[%s0 + $0x8] sm:$0xff]
  %v31 = vld [vmem:[%s0 + $0x10] sm:$0xff]
  %v32 = vld [vmem:[%s0 + $0x18] sm:$0xff]
  %v33 = vld [vmem:[%s0 + $0x20] sm:$0xff]
  %v34 = vld [vmem:[%s0 + $0x28] sm:$0xff]
  %v35 = vld [vmem:[%s0 + $0x30] sm:$0xff]
  %v36 = vld [vmem:[%s0 + $0x38] sm:$0xff]
  %v37 = vld [vmem:[%s0 + $0x40] sm:$0xff]
  %v38 = vld [vmem:[%s0 + $0x48] sm:$0xff]
  %v39 = vld [vmem:[%s0 + $0x50] sm:$0xff]
  %v40 = vld [vmem:[%s0 + $0x58] sm:$0xff]
  %v41 = vld [vmem:[%s0 + $0x60] sm:$0xff]
  %v42 = vld [vmem:[%s0 + $0x68] sm:$0xff]
  %v43 = vld [vmem:[%s0 + $0x70] sm:$0xff]
  %v44 = vld [vmem:[%s0 + $0x78] sm:$0xff]
  %v45 = vpack.c.bf16 %v30, %v29
  %v46 = vpack.c.bf16 %v32, %v31
  %v47 = vpack.c.bf16 %v34, %v33
  %v48 = vpack.c.bf16 %v36, %v35
  %v49 = vpack.c.bf16 %v38, %v37
  %v50 = vpack.c.bf16 %v40, %v39
  %v51 = vpack.c.bf16 %v42, %v41
  %v52 = vpack.c.bf16 %v44, %v43
  %v53 = vld [vmem:[%s1] sm:$0xf]
  %v54 = vld [vmem:[%s1 + $0x4] sm:$0xf]
  %v55 = vld [vmem:[%s1 + $0x8] sm:$0xf]
  %v56 = vld [vmem:[%s1 + $0xc] sm:$0xf]
  %v57 = vld [vmem:[%s1 + $0x10] sm:$0xf]
  %v58 = vld [vmem:[%s1 + $0x14] sm:$0xf]
  %v59 = vld [vmem:[%s1 + $0x18] sm:$0xf]
  %v60 = vld [vmem:[%s1 + $0x1c] sm:$0xf]
  %v61 = vld [vmem:[%s1 + $0x20] sm:$0xf]
  %v62 = vld [vmem:[%s1 + $0x24] sm:$0xf]
  %v63 = vld [vmem:[%s1 + $0x28] sm:$0xf]
  %v64 = vld [vmem:[%s1 + $0x2c] sm:$0xf]
  %v65 = vld [vmem:[%s1 + $0x30] sm:$0xf]
  %v66 = vld [vmem:[%s1 + $0x34] sm:$0xf]
  %v67 = vld [vmem:[%s1 + $0x38] sm:$0xf]
  %v68 = vld [vmem:[%s1 + $0x3c] sm:$0xf]
  %v69 = vld [vmem:[%s1 + $0x40] sm:$0xf]
  %v70 = vld [vmem:[%s1 + $0x44] sm:$0xf]
  %v71 = vld [vmem:[%s1 + $0x48] sm:$0xf]
  %v72 = vld [vmem:[%s1 + $0x4c] sm:$0xf]
  %v73 = vld [vmem:[%s1 + $0x50] sm:$0xf]
  %v74 = vld [vmem:[%s1 + $0x54] sm:$0xf]
  %v75 = vld [vmem:[%s1 + $0x58] sm:$0xf]
  %v76 = vld [vmem:[%s1 + $0x5c] sm:$0xf]
  %v77 = vld [vmem:[%s1 + $0x60] sm:$0xf]
  %v78 = vld [vmem:[%s1 + $0x64] sm:$0xf]
  %v79 = vld [vmem:[%s1 + $0x68] sm:$0xf]
  %v80 = vld [vmem:[%s1 + $0x6c] sm:$0xf]
  %v81 = vld [vmem:[%s1 + $0x70] sm:$0xf]
  %v82 = vld [vmem:[%s1 + $0x74] sm:$0xf]
  %v83 = vld [vmem:[%s1 + $0x78] sm:$0xf]
  %v84 = vld [vmem:[%s1 + $0x7c] sm:$0xf]
  %v85 = vld [vmem:[%s1 + $0x80] sm:$0xf]
  %v86 = vld [vmem:[%s1 + $0x84] sm:$0xf]
  %v87 = vld [vmem:[%s1 + $0x88] sm:$0xf]
  %v88 = vld [vmem:[%s1 + $0x8c] sm:$0xf]
  %v89 = vld [vmem:[%s1 + $0x90] sm:$0xf]
  %v90 = vld [vmem:[%s1 + $0x94] sm:$0xf]
  %v91 = vld [vmem:[%s1 + $0x98] sm:$0xf]
  %v92 = vld [vmem:[%s1 + $0x9c] sm:$0xf]
  %v93 = vld [vmem:[%s1 + $0xa0] sm:$0xf]
  %v94 = vld [vmem:[%s1 + $0xa4] sm:$0xf]
  %v95 = vld [vmem:[%s1 + $0xa8] sm:$0xf]
  %v96 = vld [vmem:[%s1 + $0xac] sm:$0xf]
  %v97 = vld [vmem:[%s1 + $0xb0] sm:$0xf]
  %v98 = vld [vmem:[%s1 + $0xb4] sm:$0xf]
  %v99 = vld [vmem:[%s1 + $0xb8] sm:$0xf]
  %v100 = vld [vmem:[%s1 + $0xbc] sm:$0xf]
  %v101 = vld [vmem:[%s1 + $0xc0] sm:$0xf]
  %v102 = vld [vmem:[%s1 + $0xc4] sm:$0xf]
  %v103 = vld [vmem:[%s1 + $0xc8] sm:$0xf]
  %v104 = vld [vmem:[%s1 + $0xcc] sm:$0xf]
  %v105 = vld [vmem:[%s1 + $0xd0] sm:$0xf]
  %v106 = vld [vmem:[%s1 + $0xd4] sm:$0xf]
  %v107 = vld [vmem:[%s1 + $0xd8] sm:$0xf]
  %v108 = vld [vmem:[%s1 + $0xdc] sm:$0xf]
  %v109 = vld [vmem:[%s1 + $0xe0] sm:$0xf]
  %v110 = vld [vmem:[%s1 + $0xe4] sm:$0xf]
  %v111 = vld [vmem:[%s1 + $0xe8] sm:$0xf]
  %v112 = vld [vmem:[%s1 + $0xec] sm:$0xf]
  %v113 = vld [vmem:[%s1 + $0xf0] sm:$0xf]
  %v114 = vld [vmem:[%s1 + $0xf4] sm:$0xf]
  %v115 = vld [vmem:[%s1 + $0xf8] sm:$0xf]
  %v116 = vld [vmem:[%s1 + $0xfc] sm:$0xf]
  %v117 = vld [vmem:[%s2] sm:$0xff]
  %v118 = vld [vmem:[%s2 + $0x8] sm:$0xff]
  %v119 = vld [vmem:[%s2 + $0x10] sm:$0xff]
  %v120 = vld [vmem:[%s2 + $0x18] sm:$0xff]
  %v121 = vld [vmem:[%s2 + $0x20] sm:$0xff]
  %v122 = vld [vmem:[%s2 + $0x28] sm:$0xff]
  %v123 = vld [vmem:[%s2 + $0x30] sm:$0xff]
  %v124 = vld [vmem:[%s2 + $0x38] sm:$0xff]
  %v125 = vld [vmem:[%s2 + $0x40] sm:$0xff]
  %v126 = vld [vmem:[%s2 + $0x48] sm:$0xff]
  %v127 = vld [vmem:[%s2 + $0x50] sm:$0xff]
  %v128 = vld [vmem:[%s2 + $0x58] sm:$0xff]
  %v129 = vld [vmem:[%s2 + $0x60] sm:$0xff]
  %v130 = vld [vmem:[%s2 + $0x68] sm:$0xff]
  %v131 = vld [vmem:[%s2 + $0x70] sm:$0xff]
  %v132 = vld [vmem:[%s2 + $0x78] sm:$0xff]
  %v133 = vld [vmem:[%s2 + $0x80] sm:$0xff]
  %v134 = vld [vmem:[%s2 + $0x88] sm:$0xff]
  %v135 = vld [vmem:[%s2 + $0x90] sm:$0xff]
  %v136 = vld [vmem:[%s2 + $0x98] sm:$0xff]
  %v137 = vld [vmem:[%s2 + $0xa0] sm:$0xff]
  %v138 = vld [vmem:[%s2 + $0xa8] sm:$0xff]
  %v139 = vld [vmem:[%s2 + $0xb0] sm:$0xff]
  %v140 = vld [vmem:[%s2 + $0xb8] sm:$0xff]
  %v141 = vld [vmem:[%s2 + $0xc0] sm:$0xff]
  %v142 = vld [vmem:[%s2 + $0xc8] sm:$0xff]
  %v143 = vld [vmem:[%s2 + $0xd0] sm:$0xff]
  %v144 = vld [vmem:[%s2 + $0xd8] sm:$0xff]
  %v145 = vld [vmem:[%s2 + $0xe0] sm:$0xff]
  %v146 = vld [vmem:[%s2 + $0xe8] sm:$0xff]
  %v147 = vld [vmem:[%s2 + $0xf0] sm:$0xff]
  %v148 = vld [vmem:[%s2 + $0xf8] sm:$0xff]
  %v149 = vld [vmem:[%s2 + $0x100] sm:$0xff]
  %v150 = vld [vmem:[%s2 + $0x108] sm:$0xff]
  %v151 = vld [vmem:[%s2 + $0x110] sm:$0xff]
  %v152 = vld [vmem:[%s2 + $0x118] sm:$0xff]
  %v153 = vld [vmem:[%s2 + $0x120] sm:$0xff]
  %v154 = vld [vmem:[%s2 + $0x128] sm:$0xff]
  %v155 = vld [vmem:[%s2 + $0x130] sm:$0xff]
  %v156 = vld [vmem:[%s2 + $0x138] sm:$0xff]
  %v157 = vld [vmem:[%s2 + $0x140] sm:$0xff]
  %v158 = vld [vmem:[%s2 + $0x148] sm:$0xff]
  %v159 = vld [vmem:[%s2 + $0x150] sm:$0xff]
  %v160 = vld [vmem:[%s2 + $0x158] sm:$0xff]
  %v161 = vld [vmem:[%s2 + $0x160] sm:$0xff]
  %v162 = vld [vmem:[%s2 + $0x168] sm:$0xff]
  %v163 = vld [vmem:[%s2 + $0x170] sm:$0xff]
  %v164 = vld [vmem:[%s2 + $0x178] sm:$0xff]
  %v165 = vld [vmem:[%s2 + $0x180] sm:$0xff]
  %v166 = vld [vmem:[%s2 + $0x188] sm:$0xff]
  %v167 = vld [vmem:[%s2 + $0x190] sm:$0xff]
  %v168 = vld [vmem:[%s2 + $0x198] sm:$0xff]
  %v169 = vld [vmem:[%s2 + $0x1a0] sm:$0xff]
  %v170 = vld [vmem:[%s2 + $0x1a8] sm:$0xff]
  %v171 = vld [vmem:[%s2 + $0x1b0] sm:$0xff]
  %v172 = vld [vmem:[%s2 + $0x1b8] sm:$0xff]
  %v173 = vld [vmem:[%s2 + $0x1c0] sm:$0xff]
  %v174 = vld [vmem:[%s2 + $0x1c8] sm:$0xff]
  %v175 = vld [vmem:[%s2 + $0x1d0] sm:$0xff]
  %v176 = vld [vmem:[%s2 + $0x1d8] sm:$0xff]
  %v177 = vld [vmem:[%s2 + $0x1e0] sm:$0xff]
  %v178 = vld [vmem:[%s2 + $0x1e8] sm:$0xff]
  %v179 = vld [vmem:[%s2 + $0x1f0] sm:$0xff]
  %v180 = vld [vmem:[%s2 + $0x1f8] sm:$0xff]
  %182 = vset.pattern.permute.xlu0 0
  %183 = vperm.xlu0 %182, %v117
  %v184 = vpop.permute.xlu0 %183
  %187 = vset.pattern.permute.xlu0 0
  %188 = vperm.xlu0 %187, %v118
  %v189 = vpop.permute.xlu0 %188
  %192 = vset.pattern.permute.xlu0 0
  %193 = vperm.xlu0 %192, %v119
  %v194 = vpop.permute.xlu0 %193
  %197 = vset.pattern.permute.xlu0 0
  %198 = vperm.xlu0 %197, %v120
  %v199 = vpop.permute.xlu0 %198
  %202 = vset.pattern.permute.xlu0 0
  %203 = vperm.xlu0 %202, %v121
  %v204 = vpop.permute.xlu0 %203
  %207 = vset.pattern.permute.xlu0 0
  %208 = vperm.xlu0 %207, %v122
  %v209 = vpop.permute.xlu0 %208
  %212 = vset.pattern.permute.xlu0 0
  %213 = vperm.xlu0 %212, %v123
  %v214 = vpop.permute.xlu0 %213
  %217 = vset.pattern.permute.xlu0 0
  %218 = vperm.xlu0 %217, %v124
  %v219 = vpop.permute.xlu0 %218
  %222 = vset.pattern.permute.xlu0 0
  %223 = vperm.xlu0 %222, %v125
  %v224 = vpop.permute.xlu0 %223
  %227 = vset.pattern.permute.xlu0 0
  %228 = vperm.xlu0 %227, %v126
  %v229 = vpop.permute.xlu0 %228
  %232 = vset.pattern.permute.xlu0 0
  %233 = vperm.xlu0 %232, %v127
  %v234 = vpop.permute.xlu0 %233
  %237 = vset.pattern.permute.xlu0 0
  %238 = vperm.xlu0 %237, %v128
  %v239 = vpop.permute.xlu0 %238
  %242 = vset.pattern.permute.xlu0 0
  %243 = vperm.xlu0 %242, %v129
  %v244 = vpop.permute.xlu0 %243
  %247 = vset.pattern.permute.xlu0 0
  %248 = vperm.xlu0 %247, %v130
  %v249 = vpop.permute.xlu0 %248
  %252 = vset.pattern.permute.xlu0 0
  %253 = vperm.xlu0 %252, %v131
  %v254 = vpop.permute.xlu0 %253
  %257 = vset.pattern.permute.xlu0 0
  %258 = vperm.xlu0 %257, %v132
  %v259 = vpop.permute.xlu0 %258
  %262 = vset.pattern.permute.xlu0 0
  %263 = vperm.xlu0 %262, %v133
  %v264 = vpop.permute.xlu0 %263
  %267 = vset.pattern.permute.xlu0 0
  %268 = vperm.xlu0 %267, %v134
  %v269 = vpop.permute.xlu0 %268
  %272 = vset.pattern.permute.xlu0 0
  %273 = vperm.xlu0 %272, %v135
  %v274 = vpop.permute.xlu0 %273
  %277 = vset.pattern.permute.xlu0 0
  %278 = vperm.xlu0 %277, %v136
  %v279 = vpop.permute.xlu0 %278
  %282 = vset.pattern.permute.xlu0 0
  %283 = vperm.xlu0 %282, %v137
  %v284 = vpop.permute.xlu0 %283
  %287 = vset.pattern.permute.xlu0 0
  %288 = vperm.xlu0 %287, %v138
  %v289 = vpop.permute.xlu0 %288
  %292 = vset.pattern.permute.xlu0 0
  %293 = vperm.xlu0 %292, %v139
  %v294 = vpop.permute.xlu0 %293
  %297 = vset.pattern.permute.xlu0 0
  %298 = vperm.xlu0 %297, %v140
  %v299 = vpop.permute.xlu0 %298
  %302 = vset.pattern.permute.xlu0 0
  %303 = vperm.xlu0 %302, %v141
  %v304 = vpop.permute.xlu0 %303
  %307 = vset.pattern.permute.xlu0 0
  %308 = vperm.xlu0 %307, %v142
  %v309 = vpop.permute.xlu0 %308
  %312 = vset.pattern.permute.xlu0 0
  %313 = vperm.xlu0 %312, %v143
  %v314 = vpop.permute.xlu0 %313
  %317 = vset.pattern.permute.xlu0 0
  %318 = vperm.xlu0 %317, %v144
  %v319 = vpop.permute.xlu0 %318
  %322 = vset.pattern.permute.xlu0 0
  %323 = vperm.xlu0 %322, %v145
  %v324 = vpop.permute.xlu0 %323
  %327 = vset.pattern.permute.xlu0 0
  %328 = vperm.xlu0 %327, %v146
  %v329 = vpop.permute.xlu0 %328
  %332 = vset.pattern.permute.xlu0 0
  %333 = vperm.xlu0 %332, %v147
  %v334 = vpop.permute.xlu0 %333
  %337 = vset.pattern.permute.xlu0 0
  %338 = vperm.xlu0 %337, %v148
  %v339 = vpop.permute.xlu0 %338
  %342 = vset.pattern.permute.xlu0 0
  %343 = vperm.xlu0 %342, %v149
  %v344 = vpop.permute.xlu0 %343
  %347 = vset.pattern.permute.xlu0 0
  %348 = vperm.xlu0 %347, %v150
  %v349 = vpop.permute.xlu0 %348
  %352 = vset.pattern.permute.xlu0 0
  %353 = vperm.xlu0 %352, %v151
  %v354 = vpop.permute.xlu0 %353
  %357 = vset.pattern.permute.xlu0 0
  %358 = vperm.xlu0 %357, %v152
  %v359 = vpop.permute.xlu0 %358
  %362 = vset.pattern.permute.xlu0 0
  %363 = vperm.xlu0 %362, %v153
  %v364 = vpop.permute.xlu0 %363
  %367 = vset.pattern.permute.xlu0 0
  %368 = vperm.xlu0 %367, %v154
  %v369 = vpop.permute.xlu0 %368
  %372 = vset.pattern.permute.xlu0 0
  %373 = vperm.xlu0 %372, %v155
  %v374 = vpop.permute.xlu0 %373
  %377 = vset.pattern.permute.xlu0 0
  %378 = vperm.xlu0 %377, %v156
  %v379 = vpop.permute.xlu0 %378
  %382 = vset.pattern.permute.xlu0 0
  %383 = vperm.xlu0 %382, %v157
  %v384 = vpop.permute.xlu0 %383
  %387 = vset.pattern.permute.xlu0 0
  %388 = vperm.xlu0 %387, %v158
  %v389 = vpop.permute.xlu0 %388
  %392 = vset.pattern.permute.xlu0 0
  %393 = vperm.xlu0 %392, %v159
  %v394 = vpop.permute.xlu0 %393
  %397 = vset.pattern.permute.xlu0 0
  %398 = vperm.xlu0 %397, %v160
  %v399 = vpop.permute.xlu0 %398
  %402 = vset.pattern.permute.xlu0 0
  %403 = vperm.xlu0 %402, %v161
  %v404 = vpop.permute.xlu0 %403
  %407 = vset.pattern.permute.xlu0 0
  %408 = vperm.xlu0 %407, %v162
  %v409 = vpop.permute.xlu0 %408
  %412 = vset.pattern.permute.xlu0 0
  %413 = vperm.xlu0 %412, %v163
  %v414 = vpop.permute.xlu0 %413
  %417 = vset.pattern.permute.xlu0 0
  %418 = vperm.xlu0 %417, %v164
  %v419 = vpop.permute.xlu0 %418
  %422 = vset.pattern.permute.xlu0 0
  %423 = vperm.xlu0 %422, %v165
  %v424 = vpop.permute.xlu0 %423
  %427 = vset.pattern.permute.xlu0 0
  %428 = vperm.xlu0 %427, %v166
  %v429 = vpop.permute.xlu0 %428
  %432 = vset.pattern.permute.xlu0 0
  %433 = vperm.xlu0 %432, %v167
  %v434 = vpop.permute.xlu0 %433
  %437 = vset.pattern.permute.xlu0 0
  %438 = vperm.xlu0 %437, %v168
  %v439 = vpop.permute.xlu0 %438
  %442 = vset.pattern.permute.xlu0 0
  %443 = vperm.xlu0 %442, %v169
  %v444 = vpop.permute.xlu0 %443
  %447 = vset.pattern.permute.xlu0 0
  %448 = vperm.xlu0 %447, %v170
  %v449 = vpop.permute.xlu0 %448
  %452 = vset.pattern.permute.xlu0 0
  %453 = vperm.xlu0 %452, %v171
  %v454 = vpop.permute.xlu0 %453
  %457 = vset.pattern.permute.xlu0 0
  %458 = vperm.xlu0 %457, %v172
  %v459 = vpop.permute.xlu0 %458
  %462 = vset.pattern.permute.xlu0 0
  %463 = vperm.xlu0 %462, %v173
  %v464 = vpop.permute.xlu0 %463
  %467 = vset.pattern.permute.xlu0 0
  %468 = vperm.xlu0 %467, %v174
  %v469 = vpop.permute.xlu0 %468
  %472 = vset.pattern.permute.xlu0 0
  %473 = vperm.xlu0 %472, %v175
  %v474 = vpop.permute.xlu0 %473
  %477 = vset.pattern.permute.xlu0 0
  %478 = vperm.xlu0 %477, %v176
  %v479 = vpop.permute.xlu0 %478
  %482 = vset.pattern.permute.xlu0 0
  %483 = vperm.xlu0 %482, %v177
  %v484 = vpop.permute.xlu0 %483
  %487 = vset.pattern.permute.xlu0 0
  %488 = vperm.xlu0 %487, %v178
  %v489 = vpop.permute.xlu0 %488
  %492 = vset.pattern.permute.xlu0 0
  %493 = vperm.xlu0 %492, %v179
  %v494 = vpop.permute.xlu0 %493
  %497 = vset.pattern.permute.xlu0 0
  %498 = vperm.xlu0 %497, %v180
  %v499 = vpop.permute.xlu0 %498
  %v565 = vunpack.c.l.b16 %v53
  %v566 = vunpack.c.l.b16 %v54
  %v567 = vunpack.c.l.b16 %v55
  %v568 = vunpack.c.l.b16 %v56
  %v569 = vunpack.c.l.b16 %v57
  %v570 = vunpack.c.l.b16 %v58
  %v571 = vunpack.c.l.b16 %v59
  %v572 = vunpack.c.l.b16 %v60
  %v573 = vunpack.c.l.b16 %v61
  %v574 = vunpack.c.l.b16 %v62
  %v575 = vunpack.c.l.b16 %v63
  %v576 = vunpack.c.l.b16 %v64
  %v577 = vunpack.c.l.b16 %v65
  %v578 = vunpack.c.l.b16 %v66
  %v579 = vunpack.c.l.b16 %v67
  %v580 = vunpack.c.l.b16 %v68
  %v581 = vunpack.c.l.b16 %v69
  %v582 = vunpack.c.l.b16 %v70
  %v583 = vunpack.c.l.b16 %v71
  %v584 = vunpack.c.l.b16 %v72
  %v585 = vunpack.c.l.b16 %v73
  %v586 = vunpack.c.l.b16 %v74
  %v587 = vunpack.c.l.b16 %v75
  %v588 = vunpack.c.l.b16 %v76
  %v589 = vunpack.c.l.b16 %v77
  %v590 = vunpack.c.l.b16 %v78
  %v591 = vunpack.c.l.b16 %v79
  %v592 = vunpack.c.l.b16 %v80
  %v593 = vunpack.c.l.b16 %v81
  %v594 = vunpack.c.l.b16 %v82
  %v595 = vunpack.c.l.b16 %v83
  %v596 = vunpack.c.l.b16 %v84
  %v597 = vunpack.c.l.b16 %v85
  %v598 = vunpack.c.l.b16 %v86
  %v599 = vunpack.c.l.b16 %v87
  %v600 = vunpack.c.l.b16 %v88
  %v601 = vunpack.c.l.b16 %v89
  %v602 = vunpack.c.l.b16 %v90
  %v603 = vunpack.c.l.b16 %v91
  %v604 = vunpack.c.l.b16 %v92
  %v605 = vunpack.c.l.b16 %v93
  %v606 = vunpack.c.l.b16 %v94
  %v607 = vunpack.c.l.b16 %v95
  %v608 = vunpack.c.l.b16 %v96
  %v609 = vunpack.c.l.b16 %v97
  %v610 = vunpack.c.l.b16 %v98
  %v611 = vunpack.c.l.b16 %v99
  %v612 = vunpack.c.l.b16 %v100
  %v613 = vunpack.c.l.b16 %v101
  %v614 = vunpack.c.l.b16 %v102
  %v615 = vunpack.c.l.b16 %v103
  %v616 = vunpack.c.l.b16 %v104
  %v617 = vunpack.c.l.b16 %v105
  %v618 = vunpack.c.l.b16 %v106
  %v619 = vunpack.c.l.b16 %v107
  %v620 = vunpack.c.l.b16 %v108
  %v621 = vunpack.c.l.b16 %v109
  %v622 = vunpack.c.l.b16 %v110
  %v623 = vunpack.c.l.b16 %v111
  %v624 = vunpack.c.l.b16 %v112
  %v625 = vunpack.c.l.b16 %v113
  %v626 = vunpack.c.l.b16 %v114
  %v627 = vunpack.c.l.b16 %v115
  %v628 = vunpack.c.l.b16 %v116
  %v629 = vpack.c.b16 %v566, %v565
  %v630 = vpack.c.b16 %v568, %v567
  %v631 = vpack.c.b16 %v570, %v569
  %v632 = vpack.c.b16 %v572, %v571
  %v633 = vpack.c.b16 %v574, %v573
  %v634 = vpack.c.b16 %v576, %v575
  %v635 = vpack.c.b16 %v578, %v577
  %v636 = vpack.c.b16 %v580, %v579
  %v637 = vpack.c.b16 %v582, %v581
  %v638 = vpack.c.b16 %v584, %v583
  %v639 = vpack.c.b16 %v586, %v585
  %v640 = vpack.c.b16 %v588, %v587
  %v641 = vpack.c.b16 %v590, %v589
  %v642 = vpack.c.b16 %v592, %v591
  %v643 = vpack.c.b16 %v594, %v593
  %v644 = vpack.c.b16 %v596, %v595
  %v645 = vpack.c.b16 %v598, %v597
  %v646 = vpack.c.b16 %v600, %v599
  %v647 = vpack.c.b16 %v602, %v601
  %v648 = vpack.c.b16 %v604, %v603
  %v649 = vpack.c.b16 %v606, %v605
  %v650 = vpack.c.b16 %v608, %v607
  %v651 = vpack.c.b16 %v610, %v609
  %v652 = vpack.c.b16 %v612, %v611
  %v653 = vpack.c.b16 %v614, %v613
  %v654 = vpack.c.b16 %v616, %v615
  %v655 = vpack.c.b16 %v618, %v617
  %v656 = vpack.c.b16 %v620, %v619
  %v657 = vpack.c.b16 %v622, %v621
  %v658 = vpack.c.b16 %v624, %v623
  %v659 = vpack.c.b16 %v626, %v625
  %v660 = vpack.c.b16 %v628, %v627
  %693 = vmatprep.subr.bf16.mxu0 0
  %694 = vmatpush1.bf16.xpose.msra.mxu0 %v52
  %695 = vmatprep.subr.bf16.mxu0 0
  %696 = vmatpush1.bf16.xpose.msra.mxu0 %v51
  %697 = vmatprep.subr.bf16.mxu0 0
  %698 = vmatpush1.bf16.xpose.msra.mxu0 %v50
  %699 = vmatprep.subr.bf16.mxu0 0
  %700 = vmatpush1.bf16.xpose.msra.mxu0 %v49
  %701 = vmatprep.subr.bf16.mxu0 0
  %702 = vmatpush1.bf16.xpose.msra.mxu0 %v48
  %703 = vmatprep.subr.bf16.mxu0 0
  %704 = vmatpush1.bf16.xpose.msra.mxu0 %v47
  %705 = vmatprep.subr.bf16.mxu0 0
  %706 = vmatpush1.bf16.xpose.msra.mxu0 %v46
  %707 = vmatprep.subr.bf16.mxu0 0
  %708 = vmatpush1.bf16.xpose.msra.mxu0 %v45
  %709 = vmatprep.subr.bf16.mxu0 0
  %710 = vmatpush2.bf16.xpose.msra.mxu0 0
  %711 = vmatprep.subr.bf16.mxu0 0
  %712 = vmatpush2.bf16.xpose.msra.mxu0 0
  %713 = vmatprep.subr.bf16.mxu0 0
  %714 = vmatpush2.bf16.xpose.msra.mxu0 0
  %715 = vmatprep.subr.bf16.mxu0 0
  %716 = vmatpush2.bf16.xpose.msra.mxu0 0
  %717 = vmatprep.subr.bf16.mxu0 0
  %718 = vmatpush2.bf16.xpose.msra.mxu0 0
  %719 = vmatprep.subr.bf16.mxu0 0
  %720 = vmatpush2.bf16.xpose.msra.mxu0 0
  %721 = vmatprep.subr.bf16.mxu0 0
  %722 = vmatpush2.bf16.xpose.msra.mxu0 0
  %723 = vmatprep.subr.bf16.mxu0 0
  %724 = vmatpush2.bf16.xpose.msra.mxu0 0
  %725 = vmatprep.mubr.bf16.mxu0 0
  %726 = vmatmul.mubr.bf16.gmra.mxu0 %v629
  %v727 = vpop.f32.mrf.mxu0
  %v728 = vadd.f32 %v184, %v727
  %v729 = vpop.f32.mrf.mxu0
  %v730 = vpop.f32.mrf.mxu0
  %v731 = vadd.f32 %v189, %v730
  %v732 = vpop.f32.mrf.mxu0
  %733 = vmatprep.mubr.bf16.mxu0 0
  %734 = vmatmul.mubr.bf16.gmra.mxu0 %v630
  %v735 = vpop.f32.mrf.mxu0
  %v736 = vadd.f32 %v194, %v735
  %v737 = vpop.f32.mrf.mxu0
  %v738 = vpop.f32.mrf.mxu0
  %v739 = vadd.f32 %v199, %v738
  %v740 = vpop.f32.mrf.mxu0
  %741 = vmatprep.mubr.bf16.mxu0 0
  %742 = vmatmul.mubr.bf16.gmra.mxu0 %v631
  %v743 = vpop.f32.mrf.mxu0
  %v744 = vadd.f32 %v204, %v743
  %v745 = vpop.f32.mrf.mxu0
  %v746 = vpop.f32.mrf.mxu0
  %v747 = vadd.f32 %v209, %v746
  %v748 = vpop.f32.mrf.mxu0
  %749 = vmatprep.mubr.bf16.mxu0 0
  %750 = vmatmul.mubr.bf16.gmra.mxu0 %v632
  %v751 = vpop.f32.mrf.mxu0
  %v752 = vadd.f32 %v214, %v751
  %v753 = vpop.f32.mrf.mxu0
  %v754 = vpop.f32.mrf.mxu0
  %v755 = vadd.f32 %v219, %v754
  %v756 = vpop.f32.mrf.mxu0
  %757 = vmatprep.mubr.bf16.mxu0 0
  %758 = vmatmul.mubr.bf16.gmra.mxu0 %v633
  %v759 = vpop.f32.mrf.mxu0
  %v760 = vadd.f32 %v224, %v759
  %v761 = vpop.f32.mrf.mxu0
  %v762 = vpop.f32.mrf.mxu0
  %v763 = vadd.f32 %v229, %v762
  %v764 = vpop.f32.mrf.mxu0
  %765 = vmatprep.mubr.bf16.mxu0 0
  %766 = vmatmul.mubr.bf16.gmra.mxu0 %v634
  %v767 = vpop.f32.mrf.mxu0
  %v768 = vadd.f32 %v234, %v767
  %v769 = vpop.f32.mrf.mxu0
  %v770 = vpop.f32.mrf.mxu0
  %v771 = vadd.f32 %v239, %v770
  %v772 = vpop.f32.mrf.mxu0
  %773 = vmatprep.mubr.bf16.mxu0 0
  %774 = vmatmul.mubr.bf16.gmra.mxu0 %v635
  %v775 = vpop.f32.mrf.mxu0
  %v776 = vadd.f32 %v244, %v775
  %v777 = vpop.f32.mrf.mxu0
  %v778 = vpop.f32.mrf.mxu0
  %v779 = vadd.f32 %v249, %v778
  %v780 = vpop.f32.mrf.mxu0
  %781 = vmatprep.mubr.bf16.mxu0 0
  %782 = vmatmul.mubr.bf16.gmra.mxu0 %v636
  %v783 = vpop.f32.mrf.mxu0
  %v784 = vadd.f32 %v254, %v783
  %v785 = vpop.f32.mrf.mxu0
  %v786 = vpop.f32.mrf.mxu0
  %v787 = vadd.f32 %v259, %v786
  %v788 = vpop.f32.mrf.mxu0
  %789 = vmatprep.mubr.bf16.mxu0 0
  %790 = vmatmul.mubr.bf16.gmra.mxu0 %v637
  %v791 = vpop.f32.mrf.mxu0
  %v792 = vadd.f32 %v264, %v791
  %v793 = vpop.f32.mrf.mxu0
  %v794 = vpop.f32.mrf.mxu0
  %v795 = vadd.f32 %v269, %v794
  %v796 = vpop.f32.mrf.mxu0
  %797 = vmatprep.mubr.bf16.mxu0 0
  %798 = vmatmul.mubr.bf16.gmra.mxu0 %v638
  %v799 = vpop.f32.mrf.mxu0
  %v800 = vadd.f32 %v274, %v799
  %v801 = vpop.f32.mrf.mxu0
  %v802 = vpop.f32.mrf.mxu0
  %v803 = vadd.f32 %v279, %v802
  %v804 = vpop.f32.mrf.mxu0
  %805 = vmatprep.mubr.bf16.mxu0 0
  %806 = vmatmul.mubr.bf16.gmra.mxu0 %v639
  %v807 = vpop.f32.mrf.mxu0
  %v808 = vadd.f32 %v284, %v807
  %v809 = vpop.f32.mrf.mxu0
  %v810 = vpop.f32.mrf.mxu0
  %v811 = vadd.f32 %v289, %v810
  %v812 = vpop.f32.mrf.mxu0
  %813 = vmatprep.mubr.bf16.mxu0 0
  %814 = vmatmul.mubr.bf16.gmra.mxu0 %v640
  %v815 = vpop.f32.mrf.mxu0
  %v816 = vadd.f32 %v294, %v815
  %v817 = vpop.f32.mrf.mxu0
  %v818 = vpop.f32.mrf.mxu0
  %v819 = vadd.f32 %v299, %v818
  %v820 = vpop.f32.mrf.mxu0
  %821 = vmatprep.mubr.bf16.mxu0 0
  %822 = vmatmul.mubr.bf16.gmra.mxu0 %v641
  %v823 = vpop.f32.mrf.mxu0
  %v824 = vadd.f32 %v304, %v823
  %v825 = vpop.f32.mrf.mxu0
  %v826 = vpop.f32.mrf.mxu0
  %v827 = vadd.f32 %v309, %v826
  %v828 = vpop.f32.mrf.mxu0
  %829 = vmatprep.mubr.bf16.mxu0 0
  %830 = vmatmul.mubr.bf16.gmra.mxu0 %v642
  %v831 = vpop.f32.mrf.mxu0
  %v832 = vadd.f32 %v314, %v831
  %v833 = vpop.f32.mrf.mxu0
  %v834 = vpop.f32.mrf.mxu0
  %v835 = vadd.f32 %v319, %v834
  %v836 = vpop.f32.mrf.mxu0
  %837 = vmatprep.mubr.bf16.mxu0 0
  %838 = vmatmul.mubr.bf16.gmra.mxu0 %v643
  %v839 = vpop.f32.mrf.mxu0
  %v840 = vadd.f32 %v324, %v839
  %v841 = vpop.f32.mrf.mxu0
  %v842 = vpop.f32.mrf.mxu0
  %v843 = vadd.f32 %v329, %v842
  %v844 = vpop.f32.mrf.mxu0
  %845 = vmatprep.mubr.bf16.mxu0 0
  %846 = vmatmul.mubr.bf16.gmra.mxu0 %v644
  %v847 = vpop.f32.mrf.mxu0
  %v848 = vadd.f32 %v334, %v847
  %v849 = vpop.f32.mrf.mxu0
  %v850 = vpop.f32.mrf.mxu0
  %v851 = vadd.f32 %v339, %v850
  %v852 = vpop.f32.mrf.mxu0
  %853 = vmatprep.mubr.bf16.mxu0 0
  %854 = vmatmul.mubr.bf16.gmra.mxu0 %v645
  %v855 = vpop.f32.mrf.mxu0
  %v856 = vadd.f32 %v344, %v855
  %v857 = vpop.f32.mrf.mxu0
  %v858 = vpop.f32.mrf.mxu0
  %v859 = vadd.f32 %v349, %v858
  %v860 = vpop.f32.mrf.mxu0
  %861 = vmatprep.mubr.bf16.mxu0 0
  %862 = vmatmul.mubr.bf16.gmra.mxu0 %v646
  %v863 = vpop.f32.mrf.mxu0
  %v864 = vadd.f32 %v354, %v863
  %v865 = vpop.f32.mrf.mxu0
  %v866 = vpop.f32.mrf.mxu0
  %v867 = vadd.f32 %v359, %v866
  %v868 = vpop.f32.mrf.mxu0
  %869 = vmatprep.mubr.bf16.mxu0 0
  %870 = vmatmul.mubr.bf16.gmra.mxu0 %v647
  %v871 = vpop.f32.mrf.mxu0
  %v872 = vadd.f32 %v364, %v871
  %v873 = vpop.f32.mrf.mxu0
  %v874 = vpop.f32.mrf.mxu0
  %v875 = vadd.f32 %v369, %v874
  %v876 = vpop.f32.mrf.mxu0
  %877 = vmatprep.mubr.bf16.mxu0 0
  %878 = vmatmul.mubr.bf16.gmra.mxu0 %v648
  %v879 = vpop.f32.mrf.mxu0
  %v880 = vadd.f32 %v374, %v879
  %v881 = vpop.f32.mrf.mxu0
  %v882 = vpop.f32.mrf.mxu0
  %v883 = vadd.f32 %v379, %v882
  %v884 = vpop.f32.mrf.mxu0
  %885 = vmatprep.mubr.bf16.mxu0 0
  %886 = vmatmul.mubr.bf16.gmra.mxu0 %v649
  %v887 = vpop.f32.mrf.mxu0
  %v888 = vadd.f32 %v384, %v887
  %v889 = vpop.f32.mrf.mxu0
  %v890 = vpop.f32.mrf.mxu0
  %v891 = vadd.f32 %v389, %v890
  %v892 = vpop.f32.mrf.mxu0
  %893 = vmatprep.mubr.bf16.mxu0 0
  %894 = vmatmul.mubr.bf16.gmra.mxu0 %v650
  %v895 = vpop.f32.mrf.mxu0
  %v896 = vadd.f32 %v394, %v895
  %v897 = vpop.f32.mrf.mxu0
  %v898 = vpop.f32.mrf.mxu0
  %v899 = vadd.f32 %v399, %v898
  %v900 = vpop.f32.mrf.mxu0
  %901 = vmatprep.mubr.bf16.mxu0 0
  %902 = vmatmul.mubr.bf16.gmra.mxu0 %v651
  %v903 = vpop.f32.mrf.mxu0
  %v904 = vadd.f32 %v404, %v903
  %v905 = vpop.f32.mrf.mxu0
  %v906 = vpop.f32.mrf.mxu0
  %v907 = vadd.f32 %v409, %v906
  %v908 = vpop.f32.mrf.mxu0
  %909 = vmatprep.mubr.bf16.mxu0 0
  %910 = vmatmul.mubr.bf16.gmra.mxu0 %v652
  %v911 = vpop.f32.mrf.mxu0
  %v912 = vadd.f32 %v414, %v911
  %v913 = vpop.f32.mrf.mxu0
  %v914 = vpop.f32.mrf.mxu0
  %v915 = vadd.f32 %v419, %v914
  %v916 = vpop.f32.mrf.mxu0
  %917 = vmatprep.mubr.bf16.mxu0 0
  %918 = vmatmul.mubr.bf16.gmra.mxu0 %v653
  %v919 = vpop.f32.mrf.mxu0
  %v920 = vadd.f32 %v424, %v919
  %v921 = vpop.f32.mrf.mxu0
  %v922 = vpop.f32.mrf.mxu0
  %v923 = vadd.f32 %v429, %v922
  %v924 = vpop.f32.mrf.mxu0
  %925 = vmatprep.mubr.bf16.mxu0 0
  %926 = vmatmul.mubr.bf16.gmra.mxu0 %v654
  %v927 = vpop.f32.mrf.mxu0
  %v928 = vadd.f32 %v434, %v927
  %v929 = vpop.f32.mrf.mxu0
  %v930 = vpop.f32.mrf.mxu0
  %v931 = vadd.f32 %v439, %v930
  %v932 = vpop.f32.mrf.mxu0
  %933 = vmatprep.mubr.bf16.mxu0 0
  %934 = vmatmul.mubr.bf16.gmra.mxu0 %v655
  %v935 = vpop.f32.mrf.mxu0
  %v936 = vadd.f32 %v444, %v935
  %v937 = vpop.f32.mrf.mxu0
  %v938 = vpop.f32.mrf.mxu0
  %v939 = vadd.f32 %v449, %v938
  %v940 = vpop.f32.mrf.mxu0
  %941 = vmatprep.mubr.bf16.mxu0 0
  %942 = vmatmul.mubr.bf16.gmra.mxu0 %v656
  %v943 = vpop.f32.mrf.mxu0
  %v944 = vadd.f32 %v454, %v943
  %v945 = vpop.f32.mrf.mxu0
  %v946 = vpop.f32.mrf.mxu0
  %v947 = vadd.f32 %v459, %v946
  %v948 = vpop.f32.mrf.mxu0
  %949 = vmatprep.mubr.bf16.mxu0 0
  %950 = vmatmul.mubr.bf16.gmra.mxu0 %v657
  %v951 = vpop.f32.mrf.mxu0
  %v952 = vadd.f32 %v464, %v951
  %v953 = vpop.f32.mrf.mxu0
  %v954 = vpop.f32.mrf.mxu0
  %v955 = vadd.f32 %v469, %v954
  %v956 = vpop.f32.mrf.mxu0
  %957 = vmatprep.mubr.bf16.mxu0 0
  %958 = vmatmul.mubr.bf16.gmra.mxu0 %v658
  %v959 = vpop.f32.mrf.mxu0
  %v960 = vadd.f32 %v474, %v959
  %v961 = vpop.f32.mrf.mxu0
  %v962 = vpop.f32.mrf.mxu0
  %v963 = vadd.f32 %v479, %v962
  %v964 = vpop.f32.mrf.mxu0
  %965 = vmatprep.mubr.bf16.mxu0 0
  %966 = vmatmul.mubr.bf16.gmra.mxu0 %v659
  %v967 = vpop.f32.mrf.mxu0
  %v968 = vadd.f32 %v484, %v967
  %v969 = vpop.f32.mrf.mxu0
  %v970 = vpop.f32.mrf.mxu0
  %v971 = vadd.f32 %v489, %v970
  %v972 = vpop.f32.mrf.mxu0
  %973 = vmatprep.mubr.bf16.mxu0 0
  %974 = vmatmul.mubr.bf16.gmra.mxu0 %v660
  %v975 = vpop.f32.mrf.mxu0
  %v976 = vadd.f32 %v494, %v975
  %v977 = vpop.f32.mrf.mxu0
  %v978 = vpop.f32.mrf.mxu0
  %v979 = vadd.f32 %v499, %v978
  %v980 = vpop.f32.mrf.mxu0
  %981 = vdwg.mxu0
  %v982 = vmax.f32 %v728, 0.0
  %v983 = vmax.f32 %v731, 0.0
  %v984 = vmax.f32 %v736, 0.0
  %v985 = vmax.f32 %v739, 0.0
  %v986 = vmax.f32 %v744, 0.0
  %v987 = vmax.f32 %v747, 0.0
  %v988 = vmax.f32 %v752, 0.0
  %v989 = vmax.f32 %v755, 0.0
  %v990 = vmax.f32 %v760, 0.0
  %v991 = vmax.f32 %v763, 0.0
  %v992 = vmax.f32 %v768, 0.0
  %v993 = vmax.f32 %v771, 0.0
  %v994 = vmax.f32 %v776, 0.0
  %v995 = vmax.f32 %v779, 0.0
  %v996 = vmax.f32 %v784, 0.0
  %v997 = vmax.f32 %v787, 0.0
  %v998 = vmax.f32 %v792, 0.0
  %v999 = vmax.f32 %v795, 0.0
  %v1000 = vmax.f32 %v800, 0.0
  %v1001 = vmax.f32 %v803, 0.0
  %v1002 = vmax.f32 %v808, 0.0
  %v1003 = vmax.f32 %v811, 0.0
  %v1004 = vmax.f32 %v816, 0.0
  %v1005 = vmax.f32 %v819, 0.0
  %v1006 = vmax.f32 %v824, 0.0
  %v1007 = vmax.f32 %v827, 0.0
  %v1008 = vmax.f32 %v832, 0.0
  %v1009 = vmax.f32 %v835, 0.0
  %v1010 = vmax.f32 %v840, 0.0
  %v1011 = vmax.f32 %v843, 0.0
  %v1012 = vmax.f32 %v848, 0.0
  %v1013 = vmax.f32 %v851, 0.0
  %v1014 = vmax.f32 %v856, 0.0
  %v1015 = vmax.f32 %v859, 0.0
  %v1016 = vmax.f32 %v864, 0.0
  %v1017 = vmax.f32 %v867, 0.0
  %v1018 = vmax.f32 %v872, 0.0
  %v1019 = vmax.f32 %v875, 0.0
  %v1020 = vmax.f32 %v880, 0.0
  %v1021 = vmax.f32 %v883, 0.0
  %v1022 = vmax.f32 %v888, 0.0
  %v1023 = vmax.f32 %v891, 0.0
  %v1024 = vmax.f32 %v896, 0.0
  %v1025 = vmax.f32 %v899, 0.0
  %v1026 = vmax.f32 %v904, 0.0
  %v1027 = vmax.f32 %v907, 0.0
  %v1028 = vmax.f32 %v912, 0.0
  %v1029 = vmax.f32 %v915, 0.0
  %v1030 = vmax.f32 %v920, 0.0
  %v1031 = vmax.f32 %v923, 0.0
  %v1032 = vmax.f32 %v928, 0.0
  %v1033 = vmax.f32 %v931, 0.0
  %v1034 = vmax.f32 %v936, 0.0
  %v1035 = vmax.f32 %v939, 0.0
  %v1036 = vmax.f32 %v944, 0.0
  %v1037 = vmax.f32 %v947, 0.0
  %v1038 = vmax.f32 %v952, 0.0
  %v1039 = vmax.f32 %v955, 0.0
  %v1040 = vmax.f32 %v960, 0.0
  %v1041 = vmax.f32 %v963, 0.0
  %v1042 = vmax.f32 %v968, 0.0
  %v1043 = vmax.f32 %v971, 0.0
  %v1044 = vmax.f32 %v976, 0.0
  %v1045 = vmax.f32 %v979, 0.0
  %v1046 = vld [vmem:[%s3] sm:$0xff]
  %v1047 = vld [vmem:[%s3 + $0x8] sm:$0xff]
  %v1048 = vld [vmem:[%s3 + $0x10] sm:$0xff]
  %v1049 = vld [vmem:[%s3 + $0x18] sm:$0xff]
  %v1050 = vld [vmem:[%s3 + $0x20] sm:$0xff]
  %v1051 = vld [vmem:[%s3 + $0x28] sm:$0xff]
  %v1052 = vld [vmem:[%s3 + $0x30] sm:$0xff]
  %v1053 = vld [vmem:[%s3 + $0x38] sm:$0xff]
  %v1054 = vld [vmem:[%s3 + $0x40] sm:$0xff]
  %v1055 = vld [vmem:[%s3 + $0x48] sm:$0xff]
  %v1056 = vld [vmem:[%s3 + $0x50] sm:$0xff]
  %v1057 = vld [vmem:[%s3 + $0x58] sm:$0xff]
  %v1058 = vld [vmem:[%s3 + $0x60] sm:$0xff]
  %v1059 = vld [vmem:[%s3 + $0x68] sm:$0xff]
  %v1060 = vld [vmem:[%s3 + $0x70] sm:$0xff]
  %v1061 = vld [vmem:[%s3 + $0x78] sm:$0xff]
  %v1062 = vld [vmem:[%s3 + $0x80] sm:$0xff]
  %v1063 = vld [vmem:[%s3 + $0x88] sm:$0xff]
  %v1064 = vld [vmem:[%s3 + $0x90] sm:$0xff]
  %v1065 = vld [vmem:[%s3 + $0x98] sm:$0xff]
  %v1066 = vld [vmem:[%s3 + $0xa0] sm:$0xff]
  %v1067 = vld [vmem:[%s3 + $0xa8] sm:$0xff]
  %v1068 = vld [vmem:[%s3 + $0xb0] sm:$0xff]
  %v1069 = vld [vmem:[%s3 + $0xb8] sm:$0xff]
  %v1070 = vld [vmem:[%s3 + $0xc0] sm:$0xff]
  %v1071 = vld [vmem:[%s3 + $0xc8] sm:$0xff]
  %v1072 = vld [vmem:[%s3 + $0xd0] sm:$0xff]
  %v1073 = vld [vmem:[%s3 + $0xd8] sm:$0xff]
  %v1074 = vld [vmem:[%s3 + $0xe0] sm:$0xff]
  %v1075 = vld [vmem:[%s3 + $0xe8] sm:$0xff]
  %v1076 = vld [vmem:[%s3 + $0xf0] sm:$0xff]
  %v1077 = vld [vmem:[%s3 + $0xf8] sm:$0xff]
  %v1078 = vld [vmem:[%s3 + $0x100] sm:$0xff]
  %v1079 = vld [vmem:[%s3 + $0x108] sm:$0xff]
  %v1080 = vld [vmem:[%s3 + $0x110] sm:$0xff]
  %v1081 = vld [vmem:[%s3 + $0x118] sm:$0xff]
  %v1082 = vld [vmem:[%s3 + $0x120] sm:$0xff]
  %v1083 = vld [vmem:[%s3 + $0x128] sm:$0xff]
  %v1084 = vld [vmem:[%s3 + $0x130] sm:$0xff]
  %v1085 = vld [vmem:[%s3 + $0x138] sm:$0xff]
  %v1086 = vld [vmem:[%s3 + $0x140] sm:$0xff]
  %v1087 = vld [vmem:[%s3 + $0x148] sm:$0xff]
  %v1088 = vld [vmem:[%s3 + $0x150] sm:$0xff]
  %v1089 = vld [vmem:[%s3 + $0x158] sm:$0xff]
  %v1090 = vld [vmem:[%s3 + $0x160] sm:$0xff]
  %v1091 = vld [vmem:[%s3 + $0x168] sm:$0xff]
  %v1092 = vld [vmem:[%s3 + $0x170] sm:$0xff]
  %v1093 = vld [vmem:[%s3 + $0x178] sm:$0xff]
  %v1094 = vld [vmem:[%s3 + $0x180] sm:$0xff]
  %v1095 = vld [vmem:[%s3 + $0x188] sm:$0xff]
  %v1096 = vld [vmem:[%s3 + $0x190] sm:$0xff]
  %v1097 = vld [vmem:[%s3 + $0x198] sm:$0xff]
  %v1098 = vld [vmem:[%s3 + $0x1a0] sm:$0xff]
  %v1099 = vld [vmem:[%s3 + $0x1a8] sm:$0xff]
  %v1100 = vld [vmem:[%s3 + $0x1b0] sm:$0xff]
  %v1101 = vld [vmem:[%s3 + $0x1b8] sm:$0xff]
  %v1102 = vld [vmem:[%s3 + $0x1c0] sm:$0xff]
  %v1103 = vld [vmem:[%s3 + $0x1c8] sm:$0xff]
  %v1104 = vld [vmem:[%s3 + $0x1d0] sm:$0xff]
  %v1105 = vld [vmem:[%s3 + $0x1d8] sm:$0xff]
  %v1106 = vld [vmem:[%s3 + $0x1e0] sm:$0xff]
  %v1107 = vld [vmem:[%s3 + $0x1e8] sm:$0xff]
  %v1108 = vld [vmem:[%s3 + $0x1f0] sm:$0xff]
  %v1109 = vld [vmem:[%s3 + $0x1f8] sm:$0xff]
  %v1110 = vpack.c.bf16 %v983, %v982
  %v1111 = vpack.c.bf16 %v985, %v984
  %v1112 = vpack.c.bf16 %v987, %v986
  %v1113 = vpack.c.bf16 %v989, %v988
  %v1114 = vpack.c.bf16 %v991, %v990
  %v1115 = vpack.c.bf16 %v993, %v992
  %v1116 = vpack.c.bf16 %v995, %v994
  %v1117 = vpack.c.bf16 %v997, %v996
  %v1118 = vpack.c.bf16 %v999, %v998
  %v1119 = vpack.c.bf16 %v1001, %v1000
  %v1120 = vpack.c.bf16 %v1003, %v1002
  %v1121 = vpack.c.bf16 %v1005, %v1004
  %v1122 = vpack.c.bf16 %v1007, %v1006
  %v1123 = vpack.c.bf16 %v1009, %v1008
  %v1124 = vpack.c.bf16 %v1011, %v1010
  %v1125 = vpack.c.bf16 %v1013, %v1012
  %v1126 = vpack.c.bf16 %v1015, %v1014
  %v1127 = vpack.c.bf16 %v1017, %v1016
  %v1128 = vpack.c.bf16 %v1019, %v1018
  %v1129 = vpack.c.bf16 %v1021, %v1020
  %v1130 = vpack.c.bf16 %v1023, %v1022
  %v1131 = vpack.c.bf16 %v1025, %v1024
  %v1132 = vpack.c.bf16 %v1027, %v1026
  %v1133 = vpack.c.bf16 %v1029, %v1028
  %v1134 = vpack.c.bf16 %v1031, %v1030
  %v1135 = vpack.c.bf16 %v1033, %v1032
  %v1136 = vpack.c.bf16 %v1035, %v1034
  %v1137 = vpack.c.bf16 %v1037, %v1036
  %v1138 = vpack.c.bf16 %v1039, %v1038
  %v1139 = vpack.c.bf16 %v1041, %v1040
  %v1140 = vpack.c.bf16 %v1043, %v1042
  %v1141 = vpack.c.bf16 %v1045, %v1044
  %v1142 = vld [vmem:[%s4] sm:$0xff]
  %v1143 = vld [vmem:[%s4 + $0x8] sm:$0xff]
  %v1144 = vld [vmem:[%s4 + $0x10] sm:$0xff]
  %v1145 = vld [vmem:[%s4 + $0x18] sm:$0xff]
  %v1146 = vld [vmem:[%s4 + $0x20] sm:$0xff]
  %v1147 = vld [vmem:[%s4 + $0x28] sm:$0xff]
  %v1148 = vld [vmem:[%s4 + $0x30] sm:$0xff]
  %v1149 = vld [vmem:[%s4 + $0x38] sm:$0xff]
  %v1150 = vld [vmem:[%s4 + $0x40] sm:$0xff]
  %v1151 = vld [vmem:[%s4 + $0x48] sm:$0xff]
  %v1152 = vld [vmem:[%s4 + $0x50] sm:$0xff]
  %v1153 = vld [vmem:[%s4 + $0x58] sm:$0xff]
  %v1154 = vld [vmem:[%s4 + $0x60] sm:$0xff]
  %v1155 = vld [vmem:[%s4 + $0x68] sm:$0xff]
  %v1156 = vld [vmem:[%s4 + $0x70] sm:$0xff]
  %v1157 = vld [vmem:[%s4 + $0x78] sm:$0xff]
  %v1158 = vld [vmem:[%s4 + $0x80] sm:$0xff]
  %v1159 = vld [vmem:[%s4 + $0x88] sm:$0xff]
  %v1160 = vld [vmem:[%s4 + $0x90] sm:$0xff]
  %v1161 = vld [vmem:[%s4 + $0x98] sm:$0xff]
  %v1162 = vld [vmem:[%s4 + $0xa0] sm:$0xff]
  %v1163 = vld [vmem:[%s4 + $0xa8] sm:$0xff]
  %v1164 = vld [vmem:[%s4 + $0xb0] sm:$0xff]
  %v1165 = vld [vmem:[%s4 + $0xb8] sm:$0xff]
  %v1166 = vld [vmem:[%s4 + $0xc0] sm:$0xff]
  %v1167 = vld [vmem:[%s4 + $0xc8] sm:$0xff]
  %v1168 = vld [vmem:[%s4 + $0xd0] sm:$0xff]
  %v1169 = vld [vmem:[%s4 + $0xd8] sm:$0xff]
  %v1170 = vld [vmem:[%s4 + $0xe0] sm:$0xff]
  %v1171 = vld [vmem:[%s4 + $0xe8] sm:$0xff]
  %v1172 = vld [vmem:[%s4 + $0xf0] sm:$0xff]
  %v1173 = vld [vmem:[%s4 + $0xf8] sm:$0xff]
  %1175 = vset.pattern.permute.xlu0 0
  %1176 = vperm.xlu0 %1175, %v1142
  %v1177 = vpop.permute.xlu0 %1176
  %1180 = vset.pattern.permute.xlu0 0
  %1181 = vperm.xlu0 %1180, %v1143
  %v1182 = vpop.permute.xlu0 %1181
  %1185 = vset.pattern.permute.xlu0 0
  %1186 = vperm.xlu0 %1185, %v1144
  %v1187 = vpop.permute.xlu0 %1186
  %1190 = vset.pattern.permute.xlu0 0
  %1191 = vperm.xlu0 %1190, %v1145
  %v1192 = vpop.permute.xlu0 %1191
  %1195 = vset.pattern.permute.xlu0 0
  %1196 = vperm.xlu0 %1195, %v1146
  %v1197 = vpop.permute.xlu0 %1196
  %1200 = vset.pattern.permute.xlu0 0
  %1201 = vperm.xlu0 %1200, %v1147
  %v1202 = vpop.permute.xlu0 %1201
  %1205 = vset.pattern.permute.xlu0 0
  %1206 = vperm.xlu0 %1205, %v1148
  %v1207 = vpop.permute.xlu0 %1206
  %1210 = vset.pattern.permute.xlu0 0
  %1211 = vperm.xlu0 %1210, %v1149
  %v1212 = vpop.permute.xlu0 %1211
  %1215 = vset.pattern.permute.xlu0 0
  %1216 = vperm.xlu0 %1215, %v1150
  %v1217 = vpop.permute.xlu0 %1216
  %1220 = vset.pattern.permute.xlu0 0
  %1221 = vperm.xlu0 %1220, %v1151
  %v1222 = vpop.permute.xlu0 %1221
  %1225 = vset.pattern.permute.xlu0 0
  %1226 = vperm.xlu0 %1225, %v1152
  %v1227 = vpop.permute.xlu0 %1226
  %1230 = vset.pattern.permute.xlu0 0
  %1231 = vperm.xlu0 %1230, %v1153
  %v1232 = vpop.permute.xlu0 %1231
  %1235 = vset.pattern.permute.xlu0 0
  %1236 = vperm.xlu0 %1235, %v1154
  %v1237 = vpop.permute.xlu0 %1236
  %1240 = vset.pattern.permute.xlu0 0
  %1241 = vperm.xlu0 %1240, %v1155
  %v1242 = vpop.permute.xlu0 %1241
  %1245 = vset.pattern.permute.xlu0 0
  %1246 = vperm.xlu0 %1245, %v1156
  %v1247 = vpop.permute.xlu0 %1246
  %1250 = vset.pattern.permute.xlu0 0
  %1251 = vperm.xlu0 %1250, %v1157
  %v1252 = vpop.permute.xlu0 %1251
  %1255 = vset.pattern.permute.xlu0 0
  %1256 = vperm.xlu0 %1255, %v1158
  %v1257 = vpop.permute.xlu0 %1256
  %1260 = vset.pattern.permute.xlu0 0
  %1261 = vperm.xlu0 %1260, %v1159
  %v1262 = vpop.permute.xlu0 %1261
  %1265 = vset.pattern.permute.xlu0 0
  %1266 = vperm.xlu0 %1265, %v1160
  %v1267 = vpop.permute.xlu0 %1266
  %1270 = vset.pattern.permute.xlu0 0
  %1271 = vperm.xlu0 %1270, %v1161
  %v1272 = vpop.permute.xlu0 %1271
  %1275 = vset.pattern.permute.xlu0 0
  %1276 = vperm.xlu0 %1275, %v1162
  %v1277 = vpop.permute.xlu0 %1276
  %1280 = vset.pattern.permute.xlu0 0
  %1281 = vperm.xlu0 %1280, %v1163
  %v1282 = vpop.permute.xlu0 %1281
  %1285 = vset.pattern.permute.xlu0 0
  %1286 = vperm.xlu0 %1285, %v1164
  %v1287 = vpop.permute.xlu0 %1286
  %1290 = vset.pattern.permute.xlu0 0
  %1291 = vperm.xlu0 %1290, %v1165
  %v1292 = vpop.permute.xlu0 %1291
  %1295 = vset.pattern.permute.xlu0 0
  %1296 = vperm.xlu0 %1295, %v1166
  %v1297 = vpop.permute.xlu0 %1296
  %1300 = vset.pattern.permute.xlu0 0
  %1301 = vperm.xlu0 %1300, %v1167
  %v1302 = vpop.permute.xlu0 %1301
  %1305 = vset.pattern.permute.xlu0 0
  %1306 = vperm.xlu0 %1305, %v1168
  %v1307 = vpop.permute.xlu0 %1306
  %1310 = vset.pattern.permute.xlu0 0
  %1311 = vperm.xlu0 %1310, %v1169
  %v1312 = vpop.permute.xlu0 %1311
  %1315 = vset.pattern.permute.xlu0 0
  %1316 = vperm.xlu0 %1315, %v1170
  %v1317 = vpop.permute.xlu0 %1316
  %1320 = vset.pattern.permute.xlu0 0
  %1321 = vperm.xlu0 %1320, %v1171
  %v1322 = vpop.permute.xlu0 %1321
  %1325 = vset.pattern.permute.xlu0 0
  %1326 = vperm.xlu0 %1325, %v1172
  %v1327 = vpop.permute.xlu0 %1326
  %1330 = vset.pattern.permute.xlu0 0
  %1331 = vperm.xlu0 %1330, %v1173
  %v1332 = vpop.permute.xlu0 %1331
  %v1398 = vunpack.c.l.b16 %v1046
  %v1399 = vunpack.c.h.b16 %v1046
  %v1400 = vunpack.c.l.b16 %v1047
  %v1401 = vunpack.c.h.b16 %v1047
  %v1402 = vunpack.c.l.b16 %v1048
  %v1403 = vunpack.c.h.b16 %v1048
  %v1404 = vunpack.c.l.b16 %v1049
  %v1405 = vunpack.c.h.b16 %v1049
  %v1406 = vunpack.c.l.b16 %v1050
  %v1407 = vunpack.c.h.b16 %v1050
  %v1408 = vunpack.c.l.b16 %v1051
  %v1409 = vunpack.c.h.b16 %v1051
  %v1410 = vunpack.c.l.b16 %v1052
  %v1411 = vunpack.c.h.b16 %v1052
  %v1412 = vunpack.c.l.b16 %v1053
  %v1413 = vunpack.c.h.b16 %v1053
  %v1414 = vunpack.c.l.b16 %v1054
  %v1415 = vunpack.c.h.b16 %v1054
  %v1416 = vunpack.c.l.b16 %v1055
  %v1417 = vunpack.c.h.b16 %v1055
  %v1418 = vunpack.c.l.b16 %v1056
  %v1419 = vunpack.c.h.b16 %v1056
  %v1420 = vunpack.c.l.b16 %v1057
  %v1421 = vunpack.c.h.b16 %v1057
  %v1422 = vunpack.c.l.b16 %v1058
  %v1423 = vunpack.c.h.b16 %v1058
  %v1424 = vunpack.c.l.b16 %v1059
  %v1425 = vunpack.c.h.b16 %v1059
  %v1426 = vunpack.c.l.b16 %v1060
  %v1427 = vunpack.c.h.b16 %v1060
  %v1428 = vunpack.c.l.b16 %v1061
  %v1429 = vunpack.c.h.b16 %v1061
  %v1430 = vunpack.c.l.b16 %v1062
  %v1431 = vunpack.c.h.b16 %v1062
  %v1432 = vunpack.c.l.b16 %v1063
  %v1433 = vunpack.c.h.b16 %v1063
  %v1434 = vunpack.c.l.b16 %v1064
  %v1435 = vunpack.c.h.b16 %v1064
  %v1436 = vunpack.c.l.b16 %v1065
  %v1437 = vunpack.c.h.b16 %v1065
  %v1438 = vunpack.c.l.b16 %v1066
  %v1439 = vunpack.c.h.b16 %v1066
  %v1440 = vunpack.c.l.b16 %v1067
  %v1441 = vunpack.c.h.b16 %v1067
  %v1442 = vunpack.c.l.b16 %v1068
  %v1443 = vunpack.c.h.b16 %v1068
  %v1444 = vunpack.c.l.b16 %v1069
  %v1445 = vunpack.c.h.b16 %v1069
  %v1446 = vunpack.c.l.b16 %v1070
  %v1447 = vunpack.c.h.b16 %v1070
  %v1448 = vunpack.c.l.b16 %v1071
  %v1449 = vunpack.c.h.b16 %v1071
  %v1450 = vunpack.c.l.b16 %v1072
  %v1451 = vunpack.c.h.b16 %v1072
  %v1452 = vunpack.c.l.b16 %v1073
  %v1453 = vunpack.c.h.b16 %v1073
  %v1454 = vunpack.c.l.b16 %v1074
  %v1455 = vunpack.c.h.b16 %v1074
  %v1456 = vunpack.c.l.b16 %v1075
  %v1457 = vunpack.c.h.b16 %v1075
  %v1458 = vunpack.c.l.b16 %v1076
  %v1459 = vunpack.c.h.b16 %v1076
  %v1460 = vunpack.c.l.b16 %v1077
  %v1461 = vunpack.c.h.b16 %v1077
  %v1462 = vunpack.c.l.b16 %v1078
  %v1463 = vunpack.c.h.b16 %v1078
  %v1464 = vunpack.c.l.b16 %v1079
  %v1465 = vunpack.c.h.b16 %v1079
  %v1466 = vunpack.c.l.b16 %v1080
  %v1467 = vunpack.c.h.b16 %v1080
  %v1468 = vunpack.c.l.b16 %v1081
  %v1469 = vunpack.c.h.b16 %v1081
  %v1470 = vunpack.c.l.b16 %v1082
  %v1471 = vunpack.c.h.b16 %v1082
  %v1472 = vunpack.c.l.b16 %v1083
  %v1473 = vunpack.c.h.b16 %v1083
  %v1474 = vunpack.c.l.b16 %v1084
  %v1475 = vunpack.c.h.b16 %v1084
  %v1476 = vunpack.c.l.b16 %v1085
  %v1477 = vunpack.c.h.b16 %v1085
  %v1478 = vunpack.c.l.b16 %v1086
  %v1479 = vunpack.c.h.b16 %v1086
  %v1480 = vunpack.c.l.b16 %v1087
  %v1481 = vunpack.c.h.b16 %v1087
  %v1482 = vunpack.c.l.b16 %v1088
  %v1483 = vunpack.c.h.b16 %v1088
  %v1484 = vunpack.c.l.b16 %v1089
  %v1485 = vunpack.c.h.b16 %v1089
  %v1486 = vunpack.c.l.b16 %v1090
  %v1487 = vunpack.c.h.b16 %v1090
  %v1488 = vunpack.c.l.b16 %v1091
  %v1489 = vunpack.c.h.b16 %v1091
  %v1490 = vunpack.c.l.b16 %v1092
  %v1491 = vunpack.c.h.b16 %v1092
  %v1492 = vunpack.c.l.b16 %v1093
  %v1493 = vunpack.c.h.b16 %v1093
  %v1494 = vunpack.c.l.b16 %v1094
  %v1495 = vunpack.c.h.b16 %v1094
  %v1496 = vunpack.c.l.b16 %v1095
  %v1497 = vunpack.c.h.b16 %v1095
  %v1498 = vunpack.c.l.b16 %v1096
  %v1499 = vunpack.c.h.b16 %v1096
  %v1500 = vunpack.c.l.b16 %v1097
  %v1501 = vunpack.c.h.b16 %v1097
  %v1502 = vunpack.c.l.b16 %v1098
  %v1503 = vunpack.c.h.b16 %v1098
  %v1504 = vunpack.c.l.b16 %v1099
  %v1505 = vunpack.c.h.b16 %v1099
  %v1506 = vunpack.c.l.b16 %v1100
  %v1507 = vunpack.c.h.b16 %v1100
  %v1508 = vunpack.c.l.b16 %v1101
  %v1509 = vunpack.c.h.b16 %v1101
  %v1510 = vunpack.c.l.b16 %v1102
  %v1511 = vunpack.c.h.b16 %v1102
  %v1512 = vunpack.c.l.b16 %v1103
  %v1513 = vunpack.c.h.b16 %v1103
  %v1514 = vunpack.c.l.b16 %v1104
  %v1515 = vunpack.c.h.b16 %v1104
  %v1516 = vunpack.c.l.b16 %v1105
  %v1517 = vunpack.c.h.b16 %v1105
  %v1518 = vunpack.c.l.b16 %v1106
  %v1519 = vunpack.c.h.b16 %v1106
  %v1520 = vunpack.c.l.b16 %v1107
  %v1521 = vunpack.c.h.b16 %v1107
  %v1522 = vunpack.c.l.b16 %v1108
  %v1523 = vunpack.c.h.b16 %v1108
  %v1524 = vunpack.c.l.b16 %v1109
  %v1525 = vunpack.c.h.b16 %v1109
  %v1526 = vpack.c.b16 %v1402, %v1398
  %v1527 = vpack.c.b16 %v1403, %v1399
  %v1528 = vpack.c.b16 %v1404, %v1400
  %v1529 = vpack.c.b16 %v1405, %v1401
  %v1530 = vpack.c.b16 %v1410, %v1406
  %v1531 = vpack.c.b16 %v1411, %v1407
  %v1532 = vpack.c.b16 %v1412, %v1408
  %v1533 = vpack.c.b16 %v1413, %v1409
  %v1534 = vpack.c.b16 %v1418, %v1414
  %v1535 = vpack.c.b16 %v1419, %v1415
  %v1536 = vpack.c.b16 %v1420, %v1416
  %v1537 = vpack.c.b16 %v1421, %v1417
  %v1538 = vpack.c.b16 %v1426, %v1422
  %v1539 = vpack.c.b16 %v1427, %v1423
  %v1540 = vpack.c.b16 %v1428, %v1424
  %v1541 = vpack.c.b16 %v1429, %v1425
  %v1542 = vpack.c.b16 %v1434, %v1430
  %v1543 = vpack.c.b16 %v1435, %v1431
  %v1544 = vpack.c.b16 %v1436, %v1432
  %v1545 = vpack.c.b16 %v1437, %v1433
  %v1546 = vpack.c.b16 %v1442, %v1438
  %v1547 = vpack.c.b16 %v1443, %v1439
  %v1548 = vpack.c.b16 %v1444, %v1440
  %v1549 = vpack.c.b16 %v1445, %v1441
  %v1550 = vpack.c.b16 %v1450, %v1446
  %v1551 = vpack.c.b16 %v1451, %v1447
  %v1552 = vpack.c.b16 %v1452, %v1448
  %v1553 = vpack.c.b16 %v1453, %v1449
  %v1554 = vpack.c.b16 %v1458, %v1454
  %v1555 = vpack.c.b16 %v1459, %v1455
  %v1556 = vpack.c.b16 %v1460, %v1456
  %v1557 = vpack.c.b16 %v1461, %v1457
  %v1558 = vpack.c.b16 %v1466, %v1462
  %v1559 = vpack.c.b16 %v1467, %v1463
  %v1560 = vpack.c.b16 %v1468, %v1464
  %v1561 = vpack.c.b16 %v1469, %v1465
  %v1562 = vpack.c.b16 %v1474, %v1470
  %v1563 = vpack.c.b16 %v1475, %v1471
  %v1564 = vpack.c.b16 %v1476, %v1472
  %v1565 = vpack.c.b16 %v1477, %v1473
  %v1566 = vpack.c.b16 %v1482, %v1478
  %v1567 = vpack.c.b16 %v1483, %v1479
  %v1568 = vpack.c.b16 %v1484, %v1480
  %v1569 = vpack.c.b16 %v1485, %v1481
  %v1570 = vpack.c.b16 %v1490, %v1486
  %v1571 = vpack.c.b16 %v1491, %v1487
  %v1572 = vpack.c.b16 %v1492, %v1488
  %v1573 = vpack.c.b16 %v1493, %v1489
  %v1574 = vpack.c.b16 %v1498, %v1494
  %v1575 = vpack.c.b16 %v1499, %v1495
  %v1576 = vpack.c.b16 %v1500, %v1496
  %v1577 = vpack.c.b16 %v1501, %v1497
  %v1578 = vpack.c.b16 %v1506, %v1502
  %v1579 = vpack.c.b16 %v1507, %v1503
  %v1580 = vpack.c.b16 %v1508, %v1504
  %v1581 = vpack.c.b16 %v1509, %v1505
  %v1582 = vpack.c.b16 %v1514, %v1510
  %v1583 = vpack.c.b16 %v1515, %v1511
  %v1584 = vpack.c.b16 %v1516, %v1512
  %v1585 = vpack.c.b16 %v1517, %v1513
  %v1586 = vpack.c.b16 %v1522, %v1518
  %v1587 = vpack.c.b16 %v1523, %v1519
  %v1588 = vpack.c.b16 %v1524, %v1520
  %v1589 = vpack.c.b16 %v1525, %v1521
  %1654 = vmatprep.subr.bf16.mxu0 0
  %1655 = vmatpush1.bf16.msra.mxu0 %v1117
  %1656 = vmatprep.subr.bf16.mxu0 0
  %1657 = vmatpush1.bf16.msra.mxu0 %v1116
  %1658 = vmatprep.subr.bf16.mxu0 0
  %1659 = vmatpush1.bf16.msra.mxu0 %v1115
  %1660 = vmatprep.subr.bf16.mxu0 0
  %1661 = vmatpush1.bf16.msra.mxu0 %v1114
  %1662 = vmatprep.subr.bf16.mxu0 0
  %1663 = vmatpush1.bf16.msra.mxu0 %v1113
  %1664 = vmatprep.subr.bf16.mxu0 0
  %1665 = vmatpush1.bf16.msra.mxu0 %v1112
  %1666 = vmatprep.subr.bf16.mxu0 0
  %1667 = vmatpush1.bf16.msra.mxu0 %v1111
  %1668 = vmatprep.subr.bf16.mxu0 0
  %1669 = vmatpush1.bf16.msra.mxu0 %v1110
  %1670 = vmatprep.subr.bf16.mxu0 0
  %1671 = vmatpush2.bf16.msra.mxu0 %v1125
  %1672 = vmatprep.subr.bf16.mxu0 0
  %1673 = vmatpush2.bf16.msra.mxu0 %v1124
  %1674 = vmatprep.subr.bf16.mxu0 0
  %1675 = vmatpush2.bf16.msra.mxu0 %v1123
  %1676 = vmatprep.subr.bf16.mxu0 0
  %1677 = vmatpush2.bf16.msra.mxu0 %v1122
  %1678 = vmatprep.subr.bf16.mxu0 0
  %1679 = vmatpush2.bf16.msra.mxu0 %v1121
  %1680 = vmatprep.subr.bf16.mxu0 0
  %1681 = vmatpush2.bf16.msra.mxu0 %v1120
  %1682 = vmatprep.subr.bf16.mxu0 0
  %1683 = vmatpush2.bf16.msra.mxu0 %v1119
  %1684 = vmatprep.subr.bf16.mxu0 0
  %1685 = vmatpush2.bf16.msra.mxu0 %v1118
  %1686 = vmatprep.mubr.bf16.mxu0 %v1527
  %1687 = vmatmul.mubr.bf16.gmra.mxu0 %v1526
  %v1688 = vpop.f32.mrf.mxu0
  %v1689 = vadd.f32 %v1177, %v1688
  %v1690 = vpop.f32.mrf.mxu0
  %v1691 = vpop.f32.mrf.mxu0
  %v1692 = vadd.f32 %v1182, %v1691
  %v1693 = vpop.f32.mrf.mxu0
  %1694 = vmatprep.mubr.bf16.mxu0 %v1531
  %1695 = vmatmul.mubr.bf16.gmra.mxu0 %v1530
  %v1696 = vpop.f32.mrf.mxu0
  %v1697 = vadd.f32 %v1187, %v1696
  %v1698 = vpop.f32.mrf.mxu0
  %v1699 = vpop.f32.mrf.mxu0
  %v1700 = vadd.f32 %v1192, %v1699
  %v1701 = vpop.f32.mrf.mxu0
  %1702 = vmatprep.mubr.bf16.mxu0 %v1535
  %1703 = vmatmul.mubr.bf16.gmra.mxu0 %v1534
  %v1704 = vpop.f32.mrf.mxu0
  %v1705 = vadd.f32 %v1197, %v1704
  %v1706 = vpop.f32.mrf.mxu0
  %v1707 = vpop.f32.mrf.mxu0
  %v1708 = vadd.f32 %v1202, %v1707
  %v1709 = vpop.f32.mrf.mxu0
  %1710 = vmatprep.mubr.bf16.mxu0 %v1539
  %1711 = vmatmul.mubr.bf16.gmra.mxu0 %v1538
  %v1712 = vpop.f32.mrf.mxu0
  %v1713 = vadd.f32 %v1207, %v1712
  %v1714 = vpop.f32.mrf.mxu0
  %v1715 = vpop.f32.mrf.mxu0
  %v1716 = vadd.f32 %v1212, %v1715
  %v1717 = vpop.f32.mrf.mxu0
  %1718 = vmatprep.mubr.bf16.mxu0 %v1543
  %1719 = vmatmul.mubr.bf16.gmra.mxu0 %v1542
  %v1720 = vpop.f32.mrf.mxu0
  %v1721 = vadd.f32 %v1217, %v1720
  %v1722 = vpop.f32.mrf.mxu0
  %v1723 = vpop.f32.mrf.mxu0
  %v1724 = vadd.f32 %v1222, %v1723
  %v1725 = vpop.f32.mrf.mxu0
  %1726 = vmatprep.mubr.bf16.mxu0 %v1547
  %1727 = vmatmul.mubr.bf16.gmra.mxu0 %v1546
  %v1728 = vpop.f32.mrf.mxu0
  %v1729 = vadd.f32 %v1227, %v1728
  %v1730 = vpop.f32.mrf.mxu0
  %v1731 = vpop.f32.mrf.mxu0
  %v1732 = vadd.f32 %v1232, %v1731
  %v1733 = vpop.f32.mrf.mxu0
  %1734 = vmatprep.mubr.bf16.mxu0 %v1551
  %1735 = vmatmul.mubr.bf16.gmra.mxu0 %v1550
  %v1736 = vpop.f32.mrf.mxu0
  %v1737 = vadd.f32 %v1237, %v1736
  %v1738 = vpop.f32.mrf.mxu0
  %v1739 = vpop.f32.mrf.mxu0
  %v1740 = vadd.f32 %v1242, %v1739
  %v1741 = vpop.f32.mrf.mxu0
  %1742 = vmatprep.mubr.bf16.mxu0 %v1555
  %1743 = vmatmul.mubr.bf16.gmra.mxu0 %v1554
  %v1744 = vpop.f32.mrf.mxu0
  %v1745 = vadd.f32 %v1247, %v1744
  %v1746 = vpop.f32.mrf.mxu0
  %v1747 = vpop.f32.mrf.mxu0
  %v1748 = vadd.f32 %v1252, %v1747
  %v1749 = vpop.f32.mrf.mxu0
  %1750 = vmatprep.mubr.bf16.mxu0 %v1559
  %1751 = vmatmul.mubr.bf16.gmra.mxu0 %v1558
  %v1752 = vpop.f32.mrf.mxu0
  %v1753 = vadd.f32 %v1257, %v1752
  %v1754 = vpop.f32.mrf.mxu0
  %v1755 = vpop.f32.mrf.mxu0
  %v1756 = vadd.f32 %v1262, %v1755
  %v1757 = vpop.f32.mrf.mxu0
  %1758 = vmatprep.mubr.bf16.mxu0 %v1563
  %1759 = vmatmul.mubr.bf16.gmra.mxu0 %v1562
  %v1760 = vpop.f32.mrf.mxu0
  %v1761 = vadd.f32 %v1267, %v1760
  %v1762 = vpop.f32.mrf.mxu0
  %v1763 = vpop.f32.mrf.mxu0
  %v1764 = vadd.f32 %v1272, %v1763
  %v1765 = vpop.f32.mrf.mxu0
  %1766 = vmatprep.mubr.bf16.mxu0 %v1567
  %1767 = vmatmul.mubr.bf16.gmra.mxu0 %v1566
  %v1768 = vpop.f32.mrf.mxu0
  %v1769 = vadd.f32 %v1277, %v1768
  %v1770 = vpop.f32.mrf.mxu0
  %v1771 = vpop.f32.mrf.mxu0
  %v1772 = vadd.f32 %v1282, %v1771
  %v1773 = vpop.f32.mrf.mxu0
  %1774 = vmatprep.mubr.bf16.mxu0 %v1571
  %1775 = vmatmul.mubr.bf16.gmra.mxu0 %v1570
  %v1776 = vpop.f32.mrf.mxu0
  %v1777 = vadd.f32 %v1287, %v1776
  %v1778 = vpop.f32.mrf.mxu0
  %v1779 = vpop.f32.mrf.mxu0
  %v1780 = vadd.f32 %v1292, %v1779
  %v1781 = vpop.f32.mrf.mxu0
  %1782 = vmatprep.mubr.bf16.mxu0 %v1575
  %1783 = vmatmul.mubr.bf16.gmra.mxu0 %v1574
  %v1784 = vpop.f32.mrf.mxu0
  %v1785 = vadd.f32 %v1297, %v1784
  %v1786 = vpop.f32.mrf.mxu0
  %v1787 = vpop.f32.mrf.mxu0
  %v1788 = vadd.f32 %v1302, %v1787
  %v1789 = vpop.f32.mrf.mxu0
  %1790 = vmatprep.mubr.bf16.mxu0 %v1579
  %1791 = vmatmul.mubr.bf16.gmra.mxu0 %v1578
  %v1792 = vpop.f32.mrf.mxu0
  %v1793 = vadd.f32 %v1307, %v1792
  %v1794 = vpop.f32.mrf.mxu0
  %v1795 = vpop.f32.mrf.mxu0
  %v1796 = vadd.f32 %v1312, %v1795
  %v1797 = vpop.f32.mrf.mxu0
  %1798 = vmatprep.mubr.bf16.mxu0 %v1583
  %1799 = vmatmul.mubr.bf16.gmra.mxu0 %v1582
  %v1800 = vpop.f32.mrf.mxu0
  %v1801 = vadd.f32 %v1317, %v1800
  %v1802 = vpop.f32.mrf.mxu0
  %v1803 = vpop.f32.mrf.mxu0
  %v1804 = vadd.f32 %v1322, %v1803
  %v1805 = vpop.f32.mrf.mxu0
  %1806 = vmatprep.mubr.bf16.mxu0 %v1587
  %1807 = vmatmul.mubr.bf16.gmra.mxu0 %v1586
  %v1808 = vpop.f32.mrf.mxu0
  %v1809 = vadd.f32 %v1327, %v1808
  %v1810 = vpop.f32.mrf.mxu0
  %v1811 = vpop.f32.mrf.mxu0
  %v1812 = vadd.f32 %v1332, %v1811
  %v1813 = vpop.f32.mrf.mxu0
  %1814 = vdwg.mxu0
  %1815 = vmatprep.subr.bf16.mxu0 0
  %1816 = vmatpush1.bf16.msra.mxu0 %v1133
  %1817 = vmatprep.subr.bf16.mxu0 0
  %1818 = vmatpush1.bf16.msra.mxu0 %v1132
  %1819 = vmatprep.subr.bf16.mxu0 0
  %1820 = vmatpush1.bf16.msra.mxu0 %v1131
  %1821 = vmatprep.subr.bf16.mxu0 0
  %1822 = vmatpush1.bf16.msra.mxu0 %v1130
  %1823 = vmatprep.subr.bf16.mxu0 0
  %1824 = vmatpush1.bf16.msra.mxu0 %v1129
  %1825 = vmatprep.subr.bf16.mxu0 0
  %1826 = vmatpush1.bf16.msra.mxu0 %v1128
  %1827 = vmatprep.subr.bf16.mxu0 0
  %1828 = vmatpush1.bf16.msra.mxu0 %v1127
  %1829 = vmatprep.subr.bf16.mxu0 0
  %1830 = vmatpush1.bf16.msra.mxu0 %v1126
  %1831 = vmatprep.subr.bf16.mxu0 0
  %1832 = vmatpush2.bf16.msra.mxu0 %v1141
  %1833 = vmatprep.subr.bf16.mxu0 0
  %1834 = vmatpush2.bf16.msra.mxu0 %v1140
  %1835 = vmatprep.subr.bf16.mxu0 0
  %1836 = vmatpush2.bf16.msra.mxu0 %v1139
  %1837 = vmatprep.subr.bf16.mxu0 0
  %1838 = vmatpush2.bf16.msra.mxu0 %v1138
  %1839 = vmatprep.subr.bf16.mxu0 0
  %1840 = vmatpush2.bf16.msra.mxu0 %v1137
  %1841 = vmatprep.subr.bf16.mxu0 0
  %1842 = vmatpush2.bf16.msra.mxu0 %v1136
  %1843 = vmatprep.subr.bf16.mxu0 0
  %1844 = vmatpush2.bf16.msra.mxu0 %v1135
  %1845 = vmatprep.subr.bf16.mxu0 0
  %1846 = vmatpush2.bf16.msra.mxu0 %v1134
  %1847 = vmatprep.mubr.bf16.mxu0 %v1529
  %1848 = vmatmul.mubr.bf16.gmra.mxu0 %v1528
  %v1849 = vpop.f32.mrf.mxu0
  %v1850 = vadd.f32 %v1689, %v1849
  %v1851 = vpop.f32.mrf.mxu0
  %v1852 = vpop.f32.mrf.mxu0
  %v1853 = vadd.f32 %v1692, %v1852
  %v1854 = vpop.f32.mrf.mxu0
  %1855 = vmatprep.mubr.bf16.mxu0 %v1533
  %1856 = vmatmul.mubr.bf16.gmra.mxu0 %v1532
  %v1857 = vpop.f32.mrf.mxu0
  %v1858 = vadd.f32 %v1697, %v1857
  %v1859 = vpop.f32.mrf.mxu0
  %v1860 = vpop.f32.mrf.mxu0
  %v1861 = vadd.f32 %v1700, %v1860
  %v1862 = vpop.f32.mrf.mxu0
  %1863 = vmatprep.mubr.bf16.mxu0 %v1537
  %1864 = vmatmul.mubr.bf16.gmra.mxu0 %v1536
  %v1865 = vpop.f32.mrf.mxu0
  %v1866 = vadd.f32 %v1705, %v1865
  %v1867 = vpop.f32.mrf.mxu0
  %v1868 = vpop.f32.mrf.mxu0
  %v1869 = vadd.f32 %v1708, %v1868
  %v1870 = vpop.f32.mrf.mxu0
  %1871 = vmatprep.mubr.bf16.mxu0 %v1541
  %1872 = vmatmul.mubr.bf16.gmra.mxu0 %v1540
  %v1873 = vpop.f32.mrf.mxu0
  %v1874 = vadd.f32 %v1713, %v1873
  %v1875 = vpop.f32.mrf.mxu0
  %v1876 = vpop.f32.mrf.mxu0
  %v1877 = vadd.f32 %v1716, %v1876
  %v1878 = vpop.f32.mrf.mxu0
  %1879 = vmatprep.mubr.bf16.mxu0 %v1545
  %1880 = vmatmul.mubr.bf16.gmra.mxu0 %v1544
  %v1881 = vpop.f32.mrf.mxu0
  %v1882 = vadd.f32 %v1721, %v1881
  %v1883 = vpop.f32.mrf.mxu0
  %v1884 = vpop.f32.mrf.mxu0
  %v1885 = vadd.f32 %v1724, %v1884
  %v1886 = vpop.f32.mrf.mxu0
  %1887 = vmatprep.mubr.bf16.mxu0 %v1549
  %1888 = vmatmul.mubr.bf16.gmra.mxu0 %v1548
  %v1889 = vpop.f32.mrf.mxu0
  %v1890 = vadd.f32 %v1729, %v1889
  %v1891 = vpop.f32.mrf.mxu0
  %v1892 = vpop.f32.mrf.mxu0
  %v1893 = vadd.f32 %v1732, %v1892
  %v1894 = vpop.f32.mrf.mxu0
  %1895 = vmatprep.mubr.bf16.mxu0 %v1553
  %1896 = vmatmul.mubr.bf16.gmra.mxu0 %v1552
  %v1897 = vpop.f32.mrf.mxu0
  %v1898 = vadd.f32 %v1737, %v1897
  %v1899 = vpop.f32.mrf.mxu0
  %v1900 = vpop.f32.mrf.mxu0
  %v1901 = vadd.f32 %v1740, %v1900
  %v1902 = vpop.f32.mrf.mxu0
  %1903 = vmatprep.mubr.bf16.mxu0 %v1557
  %1904 = vmatmul.mubr.bf16.gmra.mxu0 %v1556
  %v1905 = vpop.f32.mrf.mxu0
  %v1906 = vadd.f32 %v1745, %v1905
  %v1907 = vpop.f32.mrf.mxu0
  %v1908 = vpop.f32.mrf.mxu0
  %v1909 = vadd.f32 %v1748, %v1908
  %v1910 = vpop.f32.mrf.mxu0
  %1911 = vmatprep.mubr.bf16.mxu0 %v1561
  %1912 = vmatmul.mubr.bf16.gmra.mxu0 %v1560
  %v1913 = vpop.f32.mrf.mxu0
  %v1914 = vadd.f32 %v1753, %v1913
  %v1915 = vpop.f32.mrf.mxu0
  %v1916 = vpop.f32.mrf.mxu0
  %v1917 = vadd.f32 %v1756, %v1916
  %v1918 = vpop.f32.mrf.mxu0
  %1919 = vmatprep.mubr.bf16.mxu0 %v1565
  %1920 = vmatmul.mubr.bf16.gmra.mxu0 %v1564
  %v1921 = vpop.f32.mrf.mxu0
  %v1922 = vadd.f32 %v1761, %v1921
  %v1923 = vpop.f32.mrf.mxu0
  %v1924 = vpop.f32.mrf.mxu0
  %v1925 = vadd.f32 %v1764, %v1924
  %v1926 = vpop.f32.mrf.mxu0
  %1927 = vmatprep.mubr.bf16.mxu0 %v1569
  %1928 = vmatmul.mubr.bf16.gmra.mxu0 %v1568
  %v1929 = vpop.f32.mrf.mxu0
  %v1930 = vadd.f32 %v1769, %v1929
  %v1931 = vpop.f32.mrf.mxu0
  %v1932 = vpop.f32.mrf.mxu0
  %v1933 = vadd.f32 %v1772, %v1932
  %v1934 = vpop.f32.mrf.mxu0
  %1935 = vmatprep.mubr.bf16.mxu0 %v1573
  %1936 = vmatmul.mubr.bf16.gmra.mxu0 %v1572
  %v1937 = vpop.f32.mrf.mxu0
  %v1938 = vadd.f32 %v1777, %v1937
  %v1939 = vpop.f32.mrf.mxu0
  %v1940 = vpop.f32.mrf.mxu0
  %v1941 = vadd.f32 %v1780, %v1940
  %v1942 = vpop.f32.mrf.mxu0
  %1943 = vmatprep.mubr.bf16.mxu0 %v1577
  %1944 = vmatmul.mubr.bf16.gmra.mxu0 %v1576
  %v1945 = vpop.f32.mrf.mxu0
  %v1946 = vadd.f32 %v1785, %v1945
  %v1947 = vpop.f32.mrf.mxu0
  %v1948 = vpop.f32.mrf.mxu0
  %v1949 = vadd.f32 %v1788, %v1948
  %v1950 = vpop.f32.mrf.mxu0
  %1951 = vmatprep.mubr.bf16.mxu0 %v1581
  %1952 = vmatmul.mubr.bf16.gmra.mxu0 %v1580
  %v1953 = vpop.f32.mrf.mxu0
  %v1954 = vadd.f32 %v1793, %v1953
  %v1955 = vpop.f32.mrf.mxu0
  %v1956 = vpop.f32.mrf.mxu0
  %v1957 = vadd.f32 %v1796, %v1956
  %v1958 = vpop.f32.mrf.mxu0
  %1959 = vmatprep.mubr.bf16.mxu0 %v1585
  %1960 = vmatmul.mubr.bf16.gmra.mxu0 %v1584
  %v1961 = vpop.f32.mrf.mxu0
  %v1962 = vadd.f32 %v1801, %v1961
  %v1963 = vpop.f32.mrf.mxu0
  %v1964 = vpop.f32.mrf.mxu0
  %v1965 = vadd.f32 %v1804, %v1964
  %v1966 = vpop.f32.mrf.mxu0
  %1967 = vmatprep.mubr.bf16.mxu0 %v1589
  %1968 = vmatmul.mubr.bf16.gmra.mxu0 %v1588
  %v1969 = vpop.f32.mrf.mxu0
  %v1970 = vadd.f32 %v1809, %v1969
  %v1971 = vpop.f32.mrf.mxu0
  %v1972 = vpop.f32.mrf.mxu0
  %v1973 = vadd.f32 %v1812, %v1972
  %v1974 = vpop.f32.mrf.mxu0
  %1975 = vdwg.mxu0
  %v1976 = vmax.f32 %v1850, 0.0
  %v1977 = vmax.f32 %v1853, 0.0
  %v1978 = vmax.f32 %v1858, 0.0
  %v1979 = vmax.f32 %v1861, 0.0
  %v1980 = vmax.f32 %v1866, 0.0
  %v1981 = vmax.f32 %v1869, 0.0
  %v1982 = vmax.f32 %v1874, 0.0
  %v1983 = vmax.f32 %v1877, 0.0
  %v1984 = vmax.f32 %v1882, 0.0
  %v1985 = vmax.f32 %v1885, 0.0
  %v1986 = vmax.f32 %v1890, 0.0
  %v1987 = vmax.f32 %v1893, 0.0
  %v1988 = vmax.f32 %v1898, 0.0
  %v1989 = vmax.f32 %v1901, 0.0
  %v1990 = vmax.f32 %v1906, 0.0
  %v1991 = vmax.f32 %v1909, 0.0
  %v1992 = vmax.f32 %v1914, 0.0
  %v1993 = vmax.f32 %v1917, 0.0
  %v1994 = vmax.f32 %v1922, 0.0
  %v1995 = vmax.f32 %v1925, 0.0
  %v1996 = vmax.f32 %v1930, 0.0
  %v1997 = vmax.f32 %v1933, 0.0
  %v1998 = vmax.f32 %v1938, 0.0
  %v1999 = vmax.f32 %v1941, 0.0
  %v2000 = vmax.f32 %v1946, 0.0
  %v2001 = vmax.f32 %v1949, 0.0
  %v2002 = vmax.f32 %v1954, 0.0
  %v2003 = vmax.f32 %v1957, 0.0
  %v2004 = vmax.f32 %v1962, 0.0
  %v2005 = vmax.f32 %v1965, 0.0
  %v2006 = vmax.f32 %v1970, 0.0
  %v2007 = vmax.f32 %v1973, 0.0
  %v2008 = vld [vmem:[%s5] sm:$0xff]
  %v2009 = vld [vmem:[%s5 + $0x8] sm:$0xff]
  %v2010 = vld [vmem:[%s5 + $0x10] sm:$0xff]
  %v2011 = vld [vmem:[%s5 + $0x18] sm:$0xff]
  %v2012 = vld [vmem:[%s5 + $0x20] sm:$0xff]
  %v2013 = vld [vmem:[%s5 + $0x28] sm:$0xff]
  %v2014 = vld [vmem:[%s5 + $0x30] sm:$0xff]
  %v2015 = vld [vmem:[%s5 + $0x38] sm:$0xff]
  %v2016 = vld [vmem:[%s5 + $0x40] sm:$0xff]
  %v2017 = vld [vmem:[%s5 + $0x48] sm:$0xff]
  %v2018 = vld [vmem:[%s5 + $0x50] sm:$0xff]
  %v2019 = vld [vmem:[%s5 + $0x58] sm:$0xff]
  %v2020 = vld [vmem:[%s5 + $0x60] sm:$0xff]
  %v2021 = vld [vmem:[%s5 + $0x68] sm:$0xff]
  %v2022 = vld [vmem:[%s5 + $0x70] sm:$0xff]
  %v2023 = vld [vmem:[%s5 + $0x78] sm:$0xff]
  %v2024 = vld [vmem:[%s5 + $0x80] sm:$0xff]
  %v2025 = vld [vmem:[%s5 + $0x88] sm:$0xff]
  %v2026 = vld [vmem:[%s5 + $0x90] sm:$0xff]
  %v2027 = vld [vmem:[%s5 + $0x98] sm:$0xff]
  %v2028 = vld [vmem:[%s5 + $0xa0] sm:$0xff]
  %v2029 = vld [vmem:[%s5 + $0xa8] sm:$0xff]
  %v2030 = vld [vmem:[%s5 + $0xb0] sm:$0xff]
  %v2031 = vld [vmem:[%s5 + $0xb8] sm:$0xff]
  %v2032 = vld [vmem:[%s5 + $0xc0] sm:$0xff]
  %v2033 = vld [vmem:[%s5 + $0xc8] sm:$0xff]
  %v2034 = vld [vmem:[%s5 + $0xd0] sm:$0xff]
  %v2035 = vld [vmem:[%s5 + $0xd8] sm:$0xff]
  %v2036 = vld [vmem:[%s5 + $0xe0] sm:$0xff]
  %v2037 = vld [vmem:[%s5 + $0xe8] sm:$0xff]
  %v2038 = vld [vmem:[%s5 + $0xf0] sm:$0xff]
  %v2039 = vld [vmem:[%s5 + $0xf8] sm:$0xff]
  %2041 = vset.pattern.permute.xlu0 0
  %2042 = vperm.xlu0 %2041, %v2008
  %v2043 = vpop.permute.xlu0 %2042
  %2046 = vset.pattern.permute.xlu0 0
  %2047 = vperm.xlu0 %2046, %v2009
  %v2048 = vpop.permute.xlu0 %2047
  %2051 = vset.pattern.permute.xlu0 0
  %2052 = vperm.xlu0 %2051, %v2010
  %v2053 = vpop.permute.xlu0 %2052
  %2056 = vset.pattern.permute.xlu0 0
  %2057 = vperm.xlu0 %2056, %v2011
  %v2058 = vpop.permute.xlu0 %2057
  %2061 = vset.pattern.permute.xlu0 0
  %2062 = vperm.xlu0 %2061, %v2012
  %v2063 = vpop.permute.xlu0 %2062
  %2066 = vset.pattern.permute.xlu0 0
  %2067 = vperm.xlu0 %2066, %v2013
  %v2068 = vpop.permute.xlu0 %2067
  %2071 = vset.pattern.permute.xlu0 0
  %2072 = vperm.xlu0 %2071, %v2014
  %v2073 = vpop.permute.xlu0 %2072
  %2076 = vset.pattern.permute.xlu0 0
  %2077 = vperm.xlu0 %2076, %v2015
  %v2078 = vpop.permute.xlu0 %2077
  %2081 = vset.pattern.permute.xlu0 0
  %2082 = vperm.xlu0 %2081, %v2016
  %v2083 = vpop.permute.xlu0 %2082
  %2086 = vset.pattern.permute.xlu0 0
  %2087 = vperm.xlu0 %2086, %v2017
  %v2088 = vpop.permute.xlu0 %2087
  %2091 = vset.pattern.permute.xlu0 0
  %2092 = vperm.xlu0 %2091, %v2018
  %v2093 = vpop.permute.xlu0 %2092
  %2096 = vset.pattern.permute.xlu0 0
  %2097 = vperm.xlu0 %2096, %v2019
  %v2098 = vpop.permute.xlu0 %2097
  %2101 = vset.pattern.permute.xlu0 0
  %2102 = vperm.xlu0 %2101, %v2020
  %v2103 = vpop.permute.xlu0 %2102
  %2106 = vset.pattern.permute.xlu0 0
  %2107 = vperm.xlu0 %2106, %v2021
  %v2108 = vpop.permute.xlu0 %2107
  %2111 = vset.pattern.permute.xlu0 0
  %2112 = vperm.xlu0 %2111, %v2022
  %v2113 = vpop.permute.xlu0 %2112
  %2116 = vset.pattern.permute.xlu0 0
  %2117 = vperm.xlu0 %2116, %v2023
  %v2118 = vpop.permute.xlu0 %2117
  %2121 = vset.pattern.permute.xlu0 0
  %2122 = vperm.xlu0 %2121, %v2024
  %v2123 = vpop.permute.xlu0 %2122
  %2126 = vset.pattern.permute.xlu0 0
  %2127 = vperm.xlu0 %2126, %v2025
  %v2128 = vpop.permute.xlu0 %2127
  %2131 = vset.pattern.permute.xlu0 0
  %2132 = vperm.xlu0 %2131, %v2026
  %v2133 = vpop.permute.xlu0 %2132
  %2136 = vset.pattern.permute.xlu0 0
  %2137 = vperm.xlu0 %2136, %v2027
  %v2138 = vpop.permute.xlu0 %2137
  %2141 = vset.pattern.permute.xlu0 0
  %2142 = vperm.xlu0 %2141, %v2028
  %v2143 = vpop.permute.xlu0 %2142
  %2146 = vset.pattern.permute.xlu0 0
  %2147 = vperm.xlu0 %2146, %v2029
  %v2148 = vpop.permute.xlu0 %2147
  %2151 = vset.pattern.permute.xlu0 0
  %2152 = vperm.xlu0 %2151, %v2030
  %v2153 = vpop.permute.xlu0 %2152
  %2156 = vset.pattern.permute.xlu0 0
  %2157 = vperm.xlu0 %2156, %v2031
  %v2158 = vpop.permute.xlu0 %2157
  %2161 = vset.pattern.permute.xlu0 0
  %2162 = vperm.xlu0 %2161, %v2032
  %v2163 = vpop.permute.xlu0 %2162
  %2166 = vset.pattern.permute.xlu0 0
  %2167 = vperm.xlu0 %2166, %v2033
  %v2168 = vpop.permute.xlu0 %2167
  %2171 = vset.pattern.permute.xlu0 0
  %2172 = vperm.xlu0 %2171, %v2034
  %v2173 = vpop.permute.xlu0 %2172
  %2176 = vset.pattern.permute.xlu0 0
  %2177 = vperm.xlu0 %2176, %v2035
  %v2178 = vpop.permute.xlu0 %2177
  %2181 = vset.pattern.permute.xlu0 0
  %2182 = vperm.xlu0 %2181, %v2036
  %v2183 = vpop.permute.xlu0 %2182
  %2186 = vset.pattern.permute.xlu0 0
  %2187 = vperm.xlu0 %2186, %v2037
  %v2188 = vpop.permute.xlu0 %2187
  %2191 = vset.pattern.permute.xlu0 0
  %2192 = vperm.xlu0 %2191, %v2038
  %v2193 = vpop.permute.xlu0 %2192
  %2196 = vset.pattern.permute.xlu0 0
  %2197 = vperm.xlu0 %2196, %v2039
  %v2198 = vpop.permute.xlu0 %2197
  %v2200 = vmul.f32 %v1976, %v2043
  %v2201 = vmul.f32 %v1977, %v2048
  %v2202 = vmul.f32 %v1978, %v2053
  %v2203 = vmul.f32 %v1979, %v2058
  %v2204 = vmul.f32 %v1980, %v2063
  %v2205 = vmul.f32 %v1981, %v2068
  %v2206 = vmul.f32 %v1982, %v2073
  %v2207 = vmul.f32 %v1983, %v2078
  %v2208 = vmul.f32 %v1984, %v2083
  %v2209 = vmul.f32 %v1985, %v2088
  %v2210 = vmul.f32 %v1986, %v2093
  %v2211 = vmul.f32 %v1987, %v2098
  %v2212 = vmul.f32 %v1988, %v2103
  %v2213 = vmul.f32 %v1989, %v2108
  %v2214 = vmul.f32 %v1990, %v2113
  %v2215 = vmul.f32 %v1991, %v2118
  %v2216 = vmul.f32 %v1992, %v2123
  %v2217 = vmul.f32 %v1993, %v2128
  %v2218 = vmul.f32 %v1994, %v2133
  %v2219 = vmul.f32 %v1995, %v2138
  %v2220 = vmul.f32 %v1996, %v2143
  %v2221 = vmul.f32 %v1997, %v2148
  %v2222 = vmul.f32 %v1998, %v2153
  %v2223 = vmul.f32 %v1999, %v2158
  %v2224 = vmul.f32 %v2000, %v2163
  %v2225 = vmul.f32 %v2001, %v2168
  %v2226 = vmul.f32 %v2002, %v2173
  %v2227 = vmul.f32 %v2003, %v2178
  %v2228 = vmul.f32 %v2004, %v2183
  %v2229 = vmul.f32 %v2005, %v2188
  %v2230 = vmul.f32 %v2006, %v2193
  %v2231 = vmul.f32 %v2007, %v2198
  %v2232 = vadd.f32 %v2200, %v2201
  %v2233 = vadd.f32 %v2232, %v2202
  %v2234 = vadd.f32 %v2233, %v2203
  %v2235 = vadd.f32 %v2234, %v2204
  %v2236 = vadd.f32 %v2235, %v2205
  %v2237 = vadd.f32 %v2236, %v2206
  %v2238 = vadd.f32 %v2237, %v2207
  %v2239 = vadd.f32 %v2238, %v2208
  %v2240 = vadd.f32 %v2239, %v2209
  %v2241 = vadd.f32 %v2240, %v2210
  %v2242 = vadd.f32 %v2241, %v2211
  %v2243 = vadd.f32 %v2242, %v2212
  %v2244 = vadd.f32 %v2243, %v2213
  %v2245 = vadd.f32 %v2244, %v2214
  %v2246 = vadd.f32 %v2245, %v2215
  %v2247 = vadd.f32 %v2246, %v2216
  %v2248 = vadd.f32 %v2247, %v2217
  %v2249 = vadd.f32 %v2248, %v2218
  %v2250 = vadd.f32 %v2249, %v2219
  %v2251 = vadd.f32 %v2250, %v2220
  %v2252 = vadd.f32 %v2251, %v2221
  %v2253 = vadd.f32 %v2252, %v2222
  %v2254 = vadd.f32 %v2253, %v2223
  %v2255 = vadd.f32 %v2254, %v2224
  %v2256 = vadd.f32 %v2255, %v2225
  %v2257 = vadd.f32 %v2256, %v2226
  %v2258 = vadd.f32 %v2257, %v2227
  %v2259 = vadd.f32 %v2258, %v2228
  %v2260 = vadd.f32 %v2259, %v2229
  %v2261 = vadd.f32 %v2260, %v2230
  %v2262 = vadd.f32 %v2261, %v2231
  %v2263 = vrot.slane %v2262, 4
  %v2264 = vadd.f32 %v2262, %v2263
  %v2265 = vrot.slane %v2264, 2
  %v2266 = vadd.f32 %v2264, %v2265
  %v2267 = vrot.slane %v2266, 1
  %v2268 = vadd.f32 %v2266, %v2267
  %v2269 = vld [vmem:[#allocation2] sm:$0x1]
  %2271 = vset.pattern.permute.xlu0 0
  %2272 = vperm.xlu0 %2271, %v2269
  %v2273 = vpop.permute.xlu0 %2272
  %v2275 = vlaneseq
  %v2276 = vshrl.u32 %v2275, 7
  %v2277 = vsub.s32 0, %v2276
  %v2278 = vrot.slane %v2273, %v2277
  %v2279 = vadd.f32 %v2268, %v2278
  %v2280 = vsub.f32 0.0, %v2279
  %v2281 = vmul.f32 %v2280, 1.442695
  %v2282 = vpow.pop %v2281
  %v2283 = vadd.f32 %v2282, 1.0
  %v2284 = vrcp.pop %v2283
  %v2285 = vmul.f32 1.0, %v2284
  %2286 = vst [vmem:[%s7] sm:$0x1] %v2285
  // Predicated region
  $region30: #{_forward_impl.1} parent=0 // pred_check
    _
  $region31: #{_forward_impl.1} parent=0 // pred_check_branch
    %2288 = sbr.rel (0) target = $region33
  $region32: #{_forward_impl.1} parent=0 // pred_region
    _
  $region33: #{_forward_impl.1} parent=0 // pred_fallthru
    _
  // Predicated region
  $region34: #{_forward_impl.1} parent=0 // pred_check
    _
  $region35: #{_forward_impl.1} parent=0 // pred_check_branch
    %2290 = sbr.rel (0) target = $region37
  $region36: #{_forward_impl.1} parent=0 // pred_region
    _
  $region37: #{_forward_impl.1} parent=0 // pred_fallthru
    _

</llo_original>
